<compile_context>
chip_gen: v7x
topology: tpu7x:2x2x1
jax: 0.10.0
libtpu: 0.0.40
codegen_flags: <defaults>
</compile_context>

<pallas_src>
import functools

import jax
import jax.numpy as jnp
from jax.experimental import pallas as pl
from jax.experimental.pallas import tpu as pltpu


def _round_up(x, m):
    return ((x + m - 1) // m) * m


# ----------------------- GCN layer: H = A_hat @ (X W) + b --------------------

def _gcn_layer_kernel(a_ref, x_ref, w_ref, b_ref, o_ref, acc_ref, *, apply_relu):
    k = pl.program_id(2)

    @pl.when(k == 0)
    def _():
        acc_ref[...] = jnp.zeros_like(acc_ref)

    # XW for this contraction tile (recomputed per (i, j) tile; cheap relative
    # to the N^2 propagation), then propagate with the adjacency tile.
    xw = jnp.dot(x_ref[...], w_ref[...], preferred_element_type=jnp.float32)
    acc_ref[...] += jnp.dot(a_ref[...], xw.astype(a_ref.dtype),
                            preferred_element_type=jnp.float32)

    @pl.when(k == pl.num_programs(2) - 1)
    def _():
        h = acc_ref[...] + b_ref[...]
        if apply_relu:
            h = jnp.maximum(h, 0.0)
        o_ref[...] = h.astype(o_ref.dtype)


def gcn_layer(a_hat, x, w, b, *, apply_relu, out_dtype):
    """All operands pre-padded: a_hat (Np,Np) bf16, x (Np,Fi) bf16,
    w (Fi,Fo) bf16, b (1,Fo) f32.  Returns (Np, Fo) in out_dtype."""
    n_pad = a_hat.shape[0]
    f_in_pad = w.shape[0]
    f_out_pad = w.shape[1]

    # 128-aligned tiles (match v5e 128x128 MXU); bump to 256 on larger graphs
    # to better feed the 256x256 MXU on v6e/v7x.
    tile = 256 if (n_pad % 256 == 0 and n_pad >= 512) else 128
    tm = tk = tile
    tn = 256 if (f_out_pad % 256 == 0 and f_out_pad >= 256) else 128

    grid = (n_pad // tm, f_out_pad // tn, n_pad // tk)
    kernel = functools.partial(_gcn_layer_kernel, apply_relu=apply_relu)

    return pl.pallas_call(
        kernel,
        out_shape=jax.ShapeDtypeStruct((n_pad, f_out_pad), out_dtype),
        grid=grid,
        in_specs=[
            pl.BlockSpec((tm, tk), lambda i, j, k: (i, k)),         # A_hat tile
            pl.BlockSpec((tk, f_in_pad), lambda i, j, k: (k, 0)),   # X tile
            pl.BlockSpec((f_in_pad, tn), lambda i, j, k: (0, j)),   # W tile
            pl.BlockSpec((1, tn), lambda i, j, k: (0, j)),          # bias
        ],
        out_specs=pl.BlockSpec((tm, tn), lambda i, j, k: (i, j)),
        scratch_shapes=[pltpu.VMEM((tm, tn), jnp.float32)],
        compiler_params=pltpu.CompilerParams(
            dimension_semantics=("parallel", "parallel", "arbitrary"),
            vmem_limit_bytes=32 * 1024 * 1024),
    )(a_hat, x, w, b)


# ------------- fused endpoint gather + dot product (lane-dense out) ----------

def _edge_dot_kernel(h_ref, e_ref, o_ref):
    n_pad = h_ref.shape[0]
    te = e_ref.shape[1]
    ev = e_ref[...]                                             # (2, te) i32
    node = jax.lax.broadcasted_iota(jnp.int32, (n_pad, te), 0)  # node ids
    onehot_i = (node == ev[0:1, :]).astype(h_ref.dtype)         # (n_pad, te)
    onehot_j = (node == ev[1:2, :]).astype(h_ref.dtype)
    dn = (((0,), (0,)), ((), ()))
    # gather-via-MXU: xi_t[f, e] = h[edges[0, e], f]
    xi_t = jax.lax.dot_general(h_ref[...], onehot_i, dn,
                               preferred_element_type=jnp.float32)
    xj_t = jax.lax.dot_general(h_ref[...], onehot_j, dn,
                               preferred_element_type=jnp.float32)
    # reduce over the sublane (feature) axis -> lane-dense (1, te) output
    o_ref[...] = jnp.sum(xi_t * xj_t, axis=0, keepdims=True)


def edge_dot(h, edges_padded):
    """h: (Np, Fp) f32, edges_padded: (2, Ep) int32 -> (1, Ep) f32 dots."""
    n_pad, f_pad = h.shape
    e_pad = edges_padded.shape[1]
    te = 128
    # TODO(synk): for graphs where (Np, Fp) no longer fits VMEM, switch h to
    # memory_space=pl.ANY and DMA-gather only the referenced rows per tile.
    return pl.pallas_call(
        _edge_dot_kernel,
        out_shape=jax.ShapeDtypeStruct((1, e_pad), jnp.float32),
        grid=(e_pad // te,),
        in_specs=[
            pl.BlockSpec((n_pad, f_pad), lambda t: (0, 0)),
            pl.BlockSpec((2, te), lambda t: (0, t)),
        ],
        out_specs=pl.BlockSpec((1, te), lambda t: (0, t)),
        compiler_params=pltpu.CompilerParams(
            dimension_semantics=("parallel",),
            vmem_limit_bytes=32 * 1024 * 1024),
    )(h, edges_padded)


# ------------------------------ JAX glue -------------------------------------

def gcn_norm_dense_adj(edge_index, edge_weight, num_nodes):
    """PyG GCNConv gcn_norm: add self-loops (w=1), A_hat = D^-1/2 (A+I) D^-1/2."""
    src, dst = edge_index[0], edge_index[1]
    loop_idx = jnp.arange(num_nodes, dtype=src.dtype)
    src = jnp.concatenate([src, loop_idx])
    dst = jnp.concatenate([dst, loop_idx])
    w = jnp.concatenate([edge_weight, jnp.ones((num_nodes,), edge_weight.dtype)])
    deg = jnp.zeros((num_nodes,), w.dtype).at[dst].add(w)
    dinv = jnp.where(deg > 0, jax.lax.rsqrt(deg), 0.0)
    norm = dinv[src] * w * dinv[dst]
    a_hat = jnp.zeros((num_nodes, num_nodes), w.dtype).at[dst, src].add(norm)
    return a_hat


def link_predictor_forward(params, x, edge_index, edge_weight, edges):
    n, f_in = x.shape
    hid = params["w1"].shape[1]
    f_out = params["w2"].shape[1]

    n_pad = _round_up(n, 128)
    f_in_pad = _round_up(f_in, 128)
    hid_pad = _round_up(hid, 128)
    f_out_pad = _round_up(f_out, 128)

    # Normalized dense adjacency (plain-JAX glue), cast to bf16 for the big
    # N^2 stream; kernels accumulate in f32 on the MXU.
    # TODO(synk): dense A_hat is O(N^2) vs. PyG's sparse message passing.
    a_hat = gcn_norm_dense_adj(edge_index, edge_weight, n)
    a_p = jnp.zeros((n_pad, n_pad), jnp.bfloat16).at[:n, :n].set(
        a_hat.astype(jnp.bfloat16))
    x_p = jnp.zeros((n_pad, f_in_pad), jnp.bfloat16).at[:n, :f_in].set(
        x.astype(jnp.bfloat16))
    w1_p = jnp.zeros((f_in_pad, hid_pad), jnp.bfloat16).at[:f_in, :hid].set(
        params["w1"].astype(jnp.bfloat16))
    b1_p = jnp.zeros((1, hid_pad), jnp.float32).at[:, :hid].set(params["b1"])
    w2_p = jnp.zeros((hid_pad, f_out_pad), jnp.bfloat16).at[:hid, :f_out].set(
        params["w2"].astype(jnp.bfloat16))
    b2_p = jnp.zeros((1, f_out_pad), jnp.float32).at[:, :f_out].set(params["b2"])

    # inner model: 2-layer GCN (GCNConv -> ReLU -> GCNConv)
    # TODO(synk): dropout between GCN layers is identity in eval mode; omitted.
    h1 = gcn_layer(a_p, x_p, w1_p, b1_p, apply_relu=True, out_dtype=jnp.bfloat16)
    h2 = gcn_layer(a_p, h1, w2_p, b2_p, apply_relu=False, out_dtype=jnp.float32)
    # TODO(synk): when N_pad*HIDDEN fits VMEM, the two layers could be fused
    # into one pallas_call keeping H1 resident; kept separate so the node
    # dimension still tiles for arbitrary N.

    # LinkPredictor interaction: gather + dot fused in one kernel.
    e = edges.shape[1]
    e_pad = _round_up(e, 128)
    edges_p = jnp.zeros((2, e_pad), jnp.int32).at[:, :e].set(
        edges.astype(jnp.int32))
    dots = edge_dot(h2, edges_p)          # (1, E_pad) lane-dense
    return dots[0, :e]


# -------------------------------- main ---------------------------------------

if __name__ == "__main__":
    N, F_IN, HIDDEN, F_OUT = 16, 8, 32, 16
    E_GRAPH, E_PRED = 40, 8

    key = jax.random.PRNGKey(0)
    k = jax.random.split(key, 6)
    x = jax.random.normal(k[0], (N, F_IN), jnp.float32)
    edge_index = jax.random.randint(k[1], (2, E_GRAPH), 0, N, jnp.int32)
    edge_weight = jax.random.uniform(
        k[2], (E_GRAPH,), jnp.float32, minval=0.1, maxval=1.0)
    edges = jax.random.randint(k[3], (2, E_PRED), 0, N, jnp.int32)

    params = {
        "w1": 0.1 * jax.random.normal(k[4], (F_IN, HIDDEN), jnp.float32),
        "b1": jnp.zeros((1, HIDDEN), jnp.float32),
        "w2": 0.1 * jax.random.normal(k[5], (HIDDEN, F_OUT), jnp.float32),
        "b2": jnp.zeros((1, F_OUT), jnp.float32),
    }

    fwd = jax.jit(link_predictor_forward)
    out = jax.block_until_ready(fwd(params, x, edge_index, edge_weight, edges))

    # pure-JAX f32 reference for correctness (kernel uses bf16 operands with
    # f32 accumulation, so tolerance is loosened accordingly)
    a_hat = gcn_norm_dense_adj(edge_index, edge_weight, N)
    h_ref = jnp.maximum(a_hat @ (x @ params["w1"]) + params["b1"], 0.0)
    h_ref = a_hat @ (h_ref @ params["w2"]) + params["b2"]
    ref = (h_ref[edges[0]] * h_ref[edges[1]]).sum(-1)

    assert out.shape == (E_PRED,)
    max_err = float(jnp.max(jnp.abs(out - ref)))
    assert jnp.allclose(out, ref, atol=2e-2, rtol=2e-2), f"max_err={max_err}"
    print("KERNEL_OK")
</pallas_src>

<mosaic_0001>
module attributes {stable_mosaic.version = 11 : i64} {
  func.func @_gcn_layer_kernel(%arg0: i32, %arg1: i32, %arg2: i32, %arg3: memref<128x128xbf16, #tpu.memory_space<vmem>>, %arg4: memref<128x128xbf16, #tpu.memory_space<vmem>>, %arg5: memref<128x128xbf16, #tpu.memory_space<vmem>>, %arg6: memref<1x128xf32, #tpu.memory_space<vmem>>, %arg7: memref<128x128xbf16, #tpu.memory_space<vmem>>, %arg8: memref<128x128xf32, #tpu.memory_space<vmem>>) attributes {dimension_semantics = [#tpu.dimension_semantics<parallel>, #tpu.dimension_semantics<parallel>, #tpu.dimension_semantics<arbitrary>], iteration_bounds = array<i64: 1, 1, 1>, scalar_prefetch = 0 : i64, scratch_operands = 1 : i64, tpu.core_type = #tpu.core_type<tc>, window_params = [{transform_indices = @transform_0, window_bounds = array<i64: 128, 128>}, {transform_indices = @transform_1, window_bounds = array<i64: 128, 128>}, {transform_indices = @transform_2, window_bounds = array<i64: 128, 128>}, {transform_indices = @transform_3, window_bounds = array<i64: 1, 128>}, {transform_indices = @transform_4, window_bounds = array<i64: 128, 128>}]} {
    %c0_i32 = arith.constant 0 : i32
    %0 = arith.cmpi eq, %arg2, %c0_i32 : i32
    %1 = arith.extui %0 : i1 to i32
    %c0_i32_0 = arith.constant 0 : i32
    %2 = arith.cmpi ne, %1, %c0_i32_0 : i32
    scf.if %2 {
      %cst_13 = arith.constant 0.000000e+00 : f32
      %15 = vector.broadcast %cst_13 : f32 to vector<128x128xf32>
      %c0_14 = arith.constant 0 : index
      %c0_15 = arith.constant 0 : index
      %16 = vector.load %arg8[%c0_14, %c0_15] : memref<128x128xf32, #tpu.memory_space<vmem>>, vector<128x128xf32>
      tpu.vector_store %arg8[%c0_14, %c0_15], %15 {strides = array<i32>} : memref<128x128xf32, #tpu.memory_space<vmem>>, vector<128x128xf32>,
    } else {
    }
    %c0 = arith.constant 0 : index
    %c0_1 = arith.constant 0 : index
    %3 = vector.load %arg4[%c0, %c0_1] : memref<128x128xbf16, #tpu.memory_space<vmem>>, vector<128x128xbf16>
    %c0_2 = arith.constant 0 : index
    %c0_3 = arith.constant 0 : index
    %4 = vector.load %arg5[%c0_2, %c0_3] : memref<128x128xbf16, #tpu.memory_space<vmem>>, vector<128x128xbf16>
    %cst = arith.constant dense<0.000000e+00> : vector<128x128xf32>
    %5 = tpu.matmul %3, %4, %cst {dimension_numbers = #tpu.dot_dimension_numbers<[1], [0], [0], [1], [0, 0, 1, 1], [], []>} : vector<128x128xbf16>, vector<128x128xbf16>, vector<128x128xf32> -> vector<128x128xf32>
    %c0_4 = arith.constant 0 : index
    %c0_5 = arith.constant 0 : index
    %6 = vector.load %arg8[%c0_4, %c0_5] : memref<128x128xf32, #tpu.memory_space<vmem>>, vector<128x128xf32>
    %c0_6 = arith.constant 0 : index
    %c0_7 = arith.constant 0 : index
    %7 = vector.load %arg3[%c0_6, %c0_7] : memref<128x128xbf16, #tpu.memory_space<vmem>>, vector<128x128xbf16>
    %8 = arith.truncf %5 : vector<128x128xf32> to vector<128x128xbf16>
    %cst_8 = arith.constant dense<0.000000e+00> : vector<128x128xf32>
    %9 = tpu.matmul %7, %8, %cst_8 {dimension_numbers = #tpu.dot_dimension_numbers<[1], [0], [0], [1], [0, 0, 1, 1], [], []>} : vector<128x128xbf16>, vector<128x128xbf16>, vector<128x128xf32> -> vector<128x128xf32>
    %10 = arith.addf %6, %9 : vector<128x128xf32>
    %c0_9 = arith.constant 0 : index
    %c0_10 = arith.constant 0 : index
    %11 = vector.load %arg8[%c0_9, %c0_10] : memref<128x128xf32, #tpu.memory_space<vmem>>, vector<128x128xf32>
    tpu.vector_store %arg8[%c0_9, %c0_10], %10 {strides = array<i32>} : memref<128x128xf32, #tpu.memory_space<vmem>>, vector<128x128xf32>,
    %c0_i32_11 = arith.constant 0 : i32
    %12 = arith.cmpi eq, %arg2, %c0_i32_11 : i32
    %13 = arith.extui %12 : i1 to i32
    %c0_i32_12 = arith.constant 0 : i32
    %14 = arith.cmpi ne, %13, %c0_i32_12 : i32
    scf.if %14 {
      %c0_13 = arith.constant 0 : index
      %c0_14 = arith.constant 0 : index
      %15 = vector.load %arg8[%c0_13, %c0_14] : memref<128x128xf32, #tpu.memory_space<vmem>>, vector<128x128xf32>
      %c0_15 = arith.constant 0 : index
      %c0_16 = arith.constant 0 : index
      %16 = vector.load %arg6[%c0_15, %c0_16] : memref<1x128xf32, #tpu.memory_space<vmem>>, vector<1x128xf32>
      %17 = vector.broadcast %16 : vector<1x128xf32> to vector<128x128xf32>
      %18 = arith.addf %15, %17 : vector<128x128xf32>
      %cst_17 = arith.constant 0.000000e+00 : f32
      %19 = vector.broadcast %cst_17 : f32 to vector<128x128xf32>
      %20 = arith.maximumf %18, %19 : vector<128x128xf32>
      %21 = arith.truncf %20 : vector<128x128xf32> to vector<128x128xbf16>
      %c0_18 = arith.constant 0 : index
      %c0_19 = arith.constant 0 : index
      %22 = vector.load %arg7[%c0_18, %c0_19] : memref<128x128xbf16, #tpu.memory_space<vmem>>, vector<128x128xbf16>
      tpu.vector_store %arg7[%c0_18, %c0_19], %21 {strides = array<i32>} : memref<128x128xbf16, #tpu.memory_space<vmem>>, vector<128x128xbf16>,
    } else {
    }
    return
  }
  func.func @transform_0(%arg0: i32, %arg1: i32, %arg2: i32) -> (i32, i32) {
    %c0_i32 = arith.constant 0 : i32
    return %arg0, %arg2 : i32, i32
  }
  func.func @transform_1(%arg0: i32, %arg1: i32, %arg2: i32) -> (i32, i32) {
    %c0_i32 = arith.constant 0 : i32
    %c0_i32_0 = arith.constant 0 : i32
    return %arg2, %c0_i32 : i32, i32
  }
  func.func @transform_2(%arg0: i32, %arg1: i32, %arg2: i32) -> (i32, i32) {
    %c0_i32 = arith.constant 0 : i32
    %c0_i32_0 = arith.constant 0 : i32
    return %c0_i32, %arg1 : i32, i32
  }
  func.func @transform_3(%arg0: i32, %arg1: i32, %arg2: i32) -> (i32, i32) {
    %c0_i32 = arith.constant 0 : i32
    %c0_i32_0 = arith.constant 0 : i32
    return %c0_i32, %arg1 : i32, i32
  }
  func.func @transform_4(%arg0: i32, %arg1: i32, %arg2: i32) -> (i32, i32) {
    %c0_i32 = arith.constant 0 : i32
    return %arg0, %arg1 : i32, i32
  }
}

module attributes {stable_mosaic.version = 11 : i64} {
  func.func @_gcn_layer_kernel(%arg0: i32, %arg1: i32, %arg2: i32, %arg3: memref<128x128xbf16, #tpu.memory_space<vmem>>, %arg4: memref<128x128xbf16, #tpu.memory_space<vmem>>, %arg5: memref<128x128xbf16, #tpu.memory_space<vmem>>, %arg6: memref<1x128xf32, #tpu.memory_space<vmem>>, %arg7: memref<128x128xf32, #tpu.memory_space<vmem>>, %arg8: memref<128x128xf32, #tpu.memory_space<vmem>>) attributes {dimension_semantics = [#tpu.dimension_semantics<parallel>, #tpu.dimension_semantics<parallel>, #tpu.dimension_semantics<arbitrary>], iteration_bounds = array<i64: 1, 1, 1>, scalar_prefetch = 0 : i64, scratch_operands = 1 : i64, tpu.core_type = #tpu.core_type<tc>, window_params = [{transform_indices = @transform_0, window_bounds = array<i64: 128, 128>}, {transform_indices = @transform_1, window_bounds = array<i64: 128, 128>}, {transform_indices = @transform_2, window_bounds = array<i64: 128, 128>}, {transform_indices = @transform_3, window_bounds = array<i64: 1, 128>}, {transform_indices = @transform_4, window_bounds = array<i64: 128, 128>}]} {
    %c0_i32 = arith.constant 0 : i32
    %0 = arith.cmpi eq, %arg2, %c0_i32 : i32
    %1 = arith.extui %0 : i1 to i32
    %c0_i32_0 = arith.constant 0 : i32
    %2 = arith.cmpi ne, %1, %c0_i32_0 : i32
    scf.if %2 {
      %cst_13 = arith.constant 0.000000e+00 : f32
      %15 = vector.broadcast %cst_13 : f32 to vector<128x128xf32>
      %c0_14 = arith.constant 0 : index
      %c0_15 = arith.constant 0 : index
      %16 = vector.load %arg8[%c0_14, %c0_15] : memref<128x128xf32, #tpu.memory_space<vmem>>, vector<128x128xf32>
      tpu.vector_store %arg8[%c0_14, %c0_15], %15 {strides = array<i32>} : memref<128x128xf32, #tpu.memory_space<vmem>>, vector<128x128xf32>,
    } else {
    }
    %c0 = arith.constant 0 : index
    %c0_1 = arith.constant 0 : index
    %3 = vector.load %arg4[%c0, %c0_1] : memref<128x128xbf16, #tpu.memory_space<vmem>>, vector<128x128xbf16>
    %c0_2 = arith.constant 0 : index
    %c0_3 = arith.constant 0 : index
    %4 = vector.load %arg5[%c0_2, %c0_3] : memref<128x128xbf16, #tpu.memory_space<vmem>>, vector<128x128xbf16>
    %cst = arith.constant dense<0.000000e+00> : vector<128x128xf32>
    %5 = tpu.matmul %3, %4, %cst {dimension_numbers = #tpu.dot_dimension_numbers<[1], [0], [0], [1], [0, 0, 1, 1], [], []>} : vector<128x128xbf16>, vector<128x128xbf16>, vector<128x128xf32> -> vector<128x128xf32>
    %c0_4 = arith.constant 0 : index
    %c0_5 = arith.constant 0 : index
    %6 = vector.load %arg8[%c0_4, %c0_5] : memref<128x128xf32, #tpu.memory_space<vmem>>, vector<128x128xf32>
    %c0_6 = arith.constant 0 : index
    %c0_7 = arith.constant 0 : index
    %7 = vector.load %arg3[%c0_6, %c0_7] : memref<128x128xbf16, #tpu.memory_space<vmem>>, vector<128x128xbf16>
    %8 = arith.truncf %5 : vector<128x128xf32> to vector<128x128xbf16>
    %cst_8 = arith.constant dense<0.000000e+00> : vector<128x128xf32>
    %9 = tpu.matmul %7, %8, %cst_8 {dimension_numbers = #tpu.dot_dimension_numbers<[1], [0], [0], [1], [0, 0, 1, 1], [], []>} : vector<128x128xbf16>, vector<128x128xbf16>, vector<128x128xf32> -> vector<128x128xf32>
    %10 = arith.addf %6, %9 : vector<128x128xf32>
    %c0_9 = arith.constant 0 : index
    %c0_10 = arith.constant 0 : index
    %11 = vector.load %arg8[%c0_9, %c0_10] : memref<128x128xf32, #tpu.memory_space<vmem>>, vector<128x128xf32>
    tpu.vector_store %arg8[%c0_9, %c0_10], %10 {strides = array<i32>} : memref<128x128xf32, #tpu.memory_space<vmem>>, vector<128x128xf32>,
    %c0_i32_11 = arith.constant 0 : i32
    %12 = arith.cmpi eq, %arg2, %c0_i32_11 : i32
    %13 = arith.extui %12 : i1 to i32
    %c0_i32_12 = arith.constant 0 : i32
    %14 = arith.cmpi ne, %13, %c0_i32_12 : i32
    scf.if %14 {
      %c0_13 = arith.constant 0 : index
      %c0_14 = arith.constant 0 : index
      %15 = vector.load %arg8[%c0_13, %c0_14] : memref<128x128xf32, #tpu.memory_space<vmem>>, vector<128x128xf32>
      %c0_15 = arith.constant 0 : index
      %c0_16 = arith.constant 0 : index
      %16 = vector.load %arg6[%c0_15, %c0_16] : memref<1x128xf32, #tpu.memory_space<vmem>>, vector<1x128xf32>
      %17 = vector.broadcast %16 : vector<1x128xf32> to vector<128x128xf32>
      %18 = arith.addf %15, %17 : vector<128x128xf32>
      %c0_17 = arith.constant 0 : index
      %c0_18 = arith.constant 0 : index
      %19 = vector.load %arg7[%c0_17, %c0_18] : memref<128x128xf32, #tpu.memory_space<vmem>>, vector<128x128xf32>
      tpu.vector_store %arg7[%c0_17, %c0_18], %18 {strides = array<i32>} : memref<128x128xf32, #tpu.memory_space<vmem>>, vector<128x128xf32>,
    } else {
    }
    return
  }
  func.func @transform_0(%arg0: i32, %arg1: i32, %arg2: i32) -> (i32, i32) {
    %c0_i32 = arith.constant 0 : i32
    return %arg0, %arg2 : i32, i32
  }
  func.func @transform_1(%arg0: i32, %arg1: i32, %arg2: i32) -> (i32, i32) {
    %c0_i32 = arith.constant 0 : i32
    %c0_i32_0 = arith.constant 0 : i32
    return %arg2, %c0_i32 : i32, i32
  }
  func.func @transform_2(%arg0: i32, %arg1: i32, %arg2: i32) -> (i32, i32) {
    %c0_i32 = arith.constant 0 : i32
    %c0_i32_0 = arith.constant 0 : i32
    return %c0_i32, %arg1 : i32, i32
  }
  func.func @transform_3(%arg0: i32, %arg1: i32, %arg2: i32) -> (i32, i32) {
    %c0_i32 = arith.constant 0 : i32
    %c0_i32_0 = arith.constant 0 : i32
    return %c0_i32, %arg1 : i32, i32
  }
  func.func @transform_4(%arg0: i32, %arg1: i32, %arg2: i32) -> (i32, i32) {
    %c0_i32 = arith.constant 0 : i32
    return %arg0, %arg1 : i32, i32
  }
}

module attributes {stable_mosaic.version = 11 : i64} {
  func.func @_edge_dot_kernel(%arg0: i32, %arg1: memref<128x128xf32, #tpu.memory_space<vmem>>, %arg2: memref<2x128xi32, #tpu.memory_space<vmem>>, %arg3: memref<1x128xf32, #tpu.memory_space<vmem>>) attributes {dimension_semantics = [#tpu.dimension_semantics<parallel>], iteration_bounds = array<i64: 1>, scalar_prefetch = 0 : i64, scratch_operands = 0 : i64, tpu.core_type = #tpu.core_type<tc>, window_params = [{pipeline_mode = #tpu.pipeline_mode<synchronous>, transform_indices = @transform_0, window_bounds = array<i64: 128, 128>}, {transform_indices = @transform_1, window_bounds = array<i64: 2, 128>}, {transform_indices = @transform_2, window_bounds = array<i64: 1, 128>}]} {
    %c0 = arith.constant 0 : index
    %c0_0 = arith.constant 0 : index
    %0 = vector.load %arg2[%c0, %c0_0] : memref<2x128xi32, #tpu.memory_space<vmem>>, vector<2x128xi32>
    %1 = tpu.iota {dimensions = array<i32: 0>} : vector<128x128xi32>
    %2 = vector.extract_strided_slice %0 {offsets = [0, 0], sizes = [1, 128], strides = [1, 1]} : vector<2x128xi32> to vector<1x128xi32>
    %3 = vector.broadcast %2 : vector<1x128xi32> to vector<128x128xi32>
    %4 = arith.cmpi eq, %1, %3 : vector<128x128xi32>
    %5 = arith.extui %4 : vector<128x128xi1> to vector<128x128xi32>
    %6 = arith.sitofp %5 : vector<128x128xi32> to vector<128x128xf32>
    %7 = vector.extract_strided_slice %0 {offsets = [1, 0], sizes = [1, 128], strides = [1, 1]} : vector<2x128xi32> to vector<1x128xi32>
    %8 = vector.broadcast %7 : vector<1x128xi32> to vector<128x128xi32>
    %9 = arith.cmpi eq, %1, %8 : vector<128x128xi32>
    %10 = arith.extui %9 : vector<128x128xi1> to vector<128x128xi32>
    %11 = arith.sitofp %10 : vector<128x128xi32> to vector<128x128xf32>
    %c0_1 = arith.constant 0 : index
    %c0_2 = arith.constant 0 : index
    %12 = vector.load %arg1[%c0_1, %c0_2] : memref<128x128xf32, #tpu.memory_space<vmem>>, vector<128x128xf32>
    %cst = arith.constant dense<0.000000e+00> : vector<128x128xf32>
    %13 = tpu.matmul %12, %6, %cst {dimension_numbers = #tpu.dot_dimension_numbers<[0], [0], [1], [1], [0, 1, 1, 1], [], []>} : vector<128x128xf32>, vector<128x128xf32>, vector<128x128xf32> -> vector<128x128xf32>
    %c0_3 = arith.constant 0 : index
    %c0_4 = arith.constant 0 : index
    %14 = vector.load %arg1[%c0_3, %c0_4] : memref<128x128xf32, #tpu.memory_space<vmem>>, vector<128x128xf32>
    %cst_5 = arith.constant dense<0.000000e+00> : vector<128x128xf32>
    %15 = tpu.matmul %14, %11, %cst_5 {dimension_numbers = #tpu.dot_dimension_numbers<[0], [0], [1], [1], [0, 1, 1, 1], [], []>} : vector<128x128xf32>, vector<128x128xf32>, vector<128x128xf32> -> vector<128x128xf32>
    %16 = arith.mulf %13, %15 : vector<128x128xf32>
    %cst_6 = arith.constant dense<0.000000e+00> : vector<128xf32>
    %17 = vector.multi_reduction <add>, %16, %cst_6 [0] : vector<128x128xf32> to vector<128xf32>
    %18 = vector.shape_cast %17 : vector<128xf32> to vector<1x128xf32>
    %c0_7 = arith.constant 0 : index
    %c0_8 = arith.constant 0 : index
    %19 = vector.load %arg3[%c0_7, %c0_8] : memref<1x128xf32, #tpu.memory_space<vmem>>, vector<1x128xf32>
    tpu.vector_store %arg3[%c0_7, %c0_8], %18 {strides = array<i32>} : memref<1x128xf32, #tpu.memory_space<vmem>>, vector<1x128xf32>,
    return
  }
  func.func @transform_0(%arg0: i32) -> (i32, i32) {
    %c0_i32 = arith.constant 0 : i32
    %c0_i32_0 = arith.constant 0 : i32
    %c0_i32_1 = arith.constant 0 : i32
    return %c0_i32, %c0_i32_0 : i32, i32
  }
  func.func @transform_1(%arg0: i32) -> (i32, i32) {
    %c0_i32 = arith.constant 0 : i32
    %c0_i32_0 = arith.constant 0 : i32
    return %c0_i32, %arg0 : i32, i32
  }
  func.func @transform_2(%arg0: i32) -> (i32, i32) {
    %c0_i32 = arith.constant 0 : i32
    %c0_i32_0 = arith.constant 0 : i32
    return %c0_i32, %arg0 : i32, i32
  }
}

</mosaic_0001>

<llo_original>
// kernel: link_predictor_forward.4
$region0: #{link_predictor_forward.4}
  #allocation0 [shape = 'u32[]', space=smem, size = 0x4, offset = 0x4, fixed_abs, tag = 'smem constant byte address 0x4 - core index']
  #allocation1 [shape = 'u32[144,128]{1,0:T(1,128)}', space=vmem, size = 0x12000, scoped, tag = 'internal scratch']
  #allocation2 [shape = 'f32[128,128]{1,0:T(8,128)}', space=vmem, size = 0x10000, scoped, tag = 'scratch operand']
  %s0 = inlined_call_operand.vmem [shape: bf16[128,128], index: 0, kind: input, shape index: {}]
  %s1 = inlined_call_operand.vmem [shape: bf16[128,128], index: 1, kind: input, shape index: {}]
  %s2 = inlined_call_operand.vmem [shape: bf16[128,128], index: 2, kind: input, shape index: {}]
  %s3 = inlined_call_operand.vmem [shape: f32[1,128], index: 3, kind: input, shape index: {}]
  %s4 = inlined_call_operand.vmem [shape: f32[128,128], index: 4, kind: output, shape index: {}]
  %s5 = sld [smem:[#allocation0]]
  $region34: #{link_predictor_forward.4} parent=0
    _
  %s7 = ssub.s32 1, %s5
  %s8 = scalar_select 0, %s7, %s5
  // Predicated region
  $region2: #{link_predictor_forward.4} parent=0 // pred_check
    _
  $region3: #{link_predictor_forward.4} parent=0 // pred_check_branch
    %10 = sbr.rel (0) target = $region5
  $region4: #{link_predictor_forward.4} parent=0 // pred_region
    _
  $region5: #{link_predictor_forward.4} parent=0 // pred_fallthru
    _
  // Predicated region
  $region6: #{link_predictor_forward.4} parent=0 // pred_check
    _
  $region7: #{link_predictor_forward.4} parent=0 // pred_check_branch
    %12 = sbr.rel (0) target = $region9
  $region8: #{link_predictor_forward.4} parent=0 // pred_region
    _
  $region9: #{link_predictor_forward.4} parent=0 // pred_fallthru
    _
  // Predicated region
  $region10: #{link_predictor_forward.4} parent=0 // pred_check
    _
  $region11: #{link_predictor_forward.4} parent=0 // pred_check_branch
    %14 = sbr.rel (0) target = $region13
  $region12: #{link_predictor_forward.4} parent=0 // pred_region
    _
  $region13: #{link_predictor_forward.4} parent=0 // pred_fallthru
    _
  // Predicated region
  $region14: #{link_predictor_forward.4} parent=0 // pred_check
    _
  $region15: #{link_predictor_forward.4} parent=0 // pred_check_branch
    %16 = sbr.rel (0) target = $region17
  $region16: #{link_predictor_forward.4} parent=0 // pred_region
    _
  $region17: #{link_predictor_forward.4} parent=0 // pred_fallthru
    _
  %p18 = scmp.eq.s32.totalorder 0, 0
  // Predicated region
  $region18: #{link_predictor_forward.4} parent=0 // pred_check
    %p19 = pneg %p18
  $region19: #{link_predictor_forward.4} parent=0 // pred_check_branch
    %21 = sbr.rel (%p19) target = $region21
  $region20: #{link_predictor_forward.4} parent=0 // pred_region
    %22 = vst [vmem:[#allocation2] sm:$0xff] 0.0
    %23 = vst [vmem:[#allocation2 + $0x8] sm:$0xff] 0.0
    %24 = vst [vmem:[#allocation2 + $0x10] sm:$0xff] 0.0
    %25 = vst [vmem:[#allocation2 + $0x18] sm:$0xff] 0.0
    %26 = vst [vmem:[#allocation2 + $0x20] sm:$0xff] 0.0
    %27 = vst [vmem:[#allocation2 + $0x28] sm:$0xff] 0.0
    %28 = vst [vmem:[#allocation2 + $0x30] sm:$0xff] 0.0
    %29 = vst [vmem:[#allocation2 + $0x38] sm:$0xff] 0.0
    %30 = vst [vmem:[#allocation2 + $0x40] sm:$0xff] 0.0
    %31 = vst [vmem:[#allocation2 + $0x48] sm:$0xff] 0.0
    %32 = vst [vmem:[#allocation2 + $0x50] sm:$0xff] 0.0
    %33 = vst [vmem:[#allocation2 + $0x58] sm:$0xff] 0.0
    %34 = vst [vmem:[#allocation2 + $0x60] sm:$0xff] 0.0
    %35 = vst [vmem:[#allocation2 + $0x68] sm:$0xff] 0.0
    %36 = vst [vmem:[#allocation2 + $0x70] sm:$0xff] 0.0
    %37 = vst [vmem:[#allocation2 + $0x78] sm:$0xff] 0.0
  $region21: #{link_predictor_forward.4} parent=0 // pred_fallthru
    _
  %v38 = vld [vmem:[%s1] sm:$0xf]
  %v39 = vld [vmem:[%s1 + $0x4] sm:$0xf]
  %v40 = vld [vmem:[%s1 + $0x8] sm:$0xf]
  %v41 = vld [vmem:[%s1 + $0xc] sm:$0xf]
  %v42 = vld [vmem:[%s1 + $0x10] sm:$0xf]
  %v43 = vld [vmem:[%s1 + $0x14] sm:$0xf]
  %v44 = vld [vmem:[%s1 + $0x18] sm:$0xf]
  %v45 = vld [vmem:[%s1 + $0x1c] sm:$0xf]
  %v46 = vld [vmem:[%s1 + $0x20] sm:$0xf]
  %v47 = vld [vmem:[%s1 + $0x24] sm:$0xf]
  %v48 = vld [vmem:[%s1 + $0x28] sm:$0xf]
  %v49 = vld [vmem:[%s1 + $0x2c] sm:$0xf]
  %v50 = vld [vmem:[%s1 + $0x30] sm:$0xf]
  %v51 = vld [vmem:[%s1 + $0x34] sm:$0xf]
  %v52 = vld [vmem:[%s1 + $0x38] sm:$0xf]
  %v53 = vld [vmem:[%s1 + $0x3c] sm:$0xf]
  %v54 = vld [vmem:[%s2] sm:$0xf]
  %v55 = vld [vmem:[%s2 + $0x4] sm:$0xf]
  %v56 = vld [vmem:[%s2 + $0x8] sm:$0xf]
  %v57 = vld [vmem:[%s2 + $0xc] sm:$0xf]
  %v58 = vld [vmem:[%s2 + $0x10] sm:$0xf]
  %v59 = vld [vmem:[%s2 + $0x14] sm:$0xf]
  %v60 = vld [vmem:[%s2 + $0x18] sm:$0xf]
  %v61 = vld [vmem:[%s2 + $0x1c] sm:$0xf]
  %v62 = vld [vmem:[%s2 + $0x20] sm:$0xf]
  %v63 = vld [vmem:[%s2 + $0x24] sm:$0xf]
  %v64 = vld [vmem:[%s2 + $0x28] sm:$0xf]
  %v65 = vld [vmem:[%s2 + $0x2c] sm:$0xf]
  %v66 = vld [vmem:[%s2 + $0x30] sm:$0xf]
  %v67 = vld [vmem:[%s2 + $0x34] sm:$0xf]
  %v68 = vld [vmem:[%s2 + $0x38] sm:$0xf]
  %v69 = vld [vmem:[%s2 + $0x3c] sm:$0xf]
  %v86 = vunpack.c.l.b16 %v38
  %v87 = vunpack.c.l.b16 %v39
  %v88 = vunpack.c.l.b16 %v40
  %v89 = vunpack.c.l.b16 %v41
  %v90 = vunpack.c.l.b16 %v42
  %v91 = vunpack.c.l.b16 %v43
  %v92 = vunpack.c.l.b16 %v44
  %v93 = vunpack.c.l.b16 %v45
  %v94 = vunpack.c.l.b16 %v46
  %v95 = vunpack.c.l.b16 %v47
  %v96 = vunpack.c.l.b16 %v48
  %v97 = vunpack.c.l.b16 %v49
  %v98 = vunpack.c.l.b16 %v50
  %v99 = vunpack.c.l.b16 %v51
  %v100 = vunpack.c.l.b16 %v52
  %v101 = vunpack.c.l.b16 %v53
  %v102 = vpack.c.b16 %v87, %v86
  %v103 = vpack.c.b16 %v89, %v88
  %v104 = vpack.c.b16 %v91, %v90
  %v105 = vpack.c.b16 %v93, %v92
  %v106 = vpack.c.b16 %v95, %v94
  %v107 = vpack.c.b16 %v97, %v96
  %v108 = vpack.c.b16 %v99, %v98
  %v109 = vpack.c.b16 %v101, %v100
  %v134 = vunpack.c.l.b16 %v54
  %v135 = vunpack.c.l.b16 %v55
  %v136 = vunpack.c.l.b16 %v56
  %v137 = vunpack.c.l.b16 %v57
  %v138 = vunpack.c.l.b16 %v58
  %v139 = vunpack.c.l.b16 %v59
  %v140 = vunpack.c.l.b16 %v60
  %v141 = vunpack.c.l.b16 %v61
  %v142 = vunpack.c.l.b16 %v62
  %v143 = vunpack.c.l.b16 %v63
  %v144 = vunpack.c.l.b16 %v64
  %v145 = vunpack.c.l.b16 %v65
  %v146 = vunpack.c.l.b16 %v66
  %v147 = vunpack.c.l.b16 %v67
  %v148 = vunpack.c.l.b16 %v68
  %v149 = vunpack.c.l.b16 %v69
  %v150 = vpack.c.b16 %v135, %v134
  %v151 = vpack.c.b16 %v137, %v136
  %v152 = vpack.c.b16 %v139, %v138
  %v153 = vpack.c.b16 %v141, %v140
  %v154 = vpack.c.b16 %v143, %v142
  %v155 = vpack.c.b16 %v145, %v144
  %v156 = vpack.c.b16 %v147, %v146
  %v157 = vpack.c.b16 %v149, %v148
  %166 = vmatprep.subr.bf16.mxu0 0
  %167 = vmatpush1.bf16.msra.mxu0 %v150
  %168 = vmatprep.subr.bf16.mxu0 0
  %169 = vmatpush1.bf16.msra.mxu0 %v151
  %170 = vmatprep.subr.bf16.mxu0 0
  %171 = vmatpush1.bf16.msra.mxu0 %v152
  %172 = vmatprep.subr.bf16.mxu0 0
  %173 = vmatpush1.bf16.msra.mxu0 %v153
  %174 = vmatprep.subr.bf16.mxu0 0
  %175 = vmatpush1.bf16.msra.mxu0 %v154
  %176 = vmatprep.subr.bf16.mxu0 0
  %177 = vmatpush1.bf16.msra.mxu0 %v155
  %178 = vmatprep.subr.bf16.mxu0 0
  %179 = vmatpush1.bf16.msra.mxu0 %v156
  %180 = vmatprep.subr.bf16.mxu0 0
  %181 = vmatpush1.bf16.msra.mxu0 %v157
  %182 = vmatprep.subr.bf16.mxu0 0
  %183 = vmatpush1.bf16.msra.mxu0 0
  %184 = vmatprep.subr.bf16.mxu0 0
  %185 = vmatpush1.bf16.msra.mxu0 0
  %186 = vmatprep.subr.bf16.mxu0 0
  %187 = vmatpush1.bf16.msra.mxu0 0
  %188 = vmatprep.subr.bf16.mxu0 0
  %189 = vmatpush1.bf16.msra.mxu0 0
  %190 = vmatprep.subr.bf16.mxu0 0
  %191 = vmatpush1.bf16.msra.mxu0 0
  %192 = vmatprep.subr.bf16.mxu0 0
  %193 = vmatpush1.bf16.msra.mxu0 0
  %194 = vmatprep.subr.bf16.mxu0 0
  %195 = vmatpush1.bf16.msra.mxu0 0
  %196 = vmatprep.subr.bf16.mxu0 0
  %197 = vmatpush1.bf16.msra.mxu0 0
  %198 = vmatprep.mubr.bf16.mxu0 0
  %199 = vmatmul.mubr.bf16.gmra.mrb[0].mxu0 %v102
  %v200 = vpop.f32.mrb[0].mxu0
  %v201 = vadd.f32 0.0, %v200
  %v202 = vpop.f32.mrb[0].mxu0
  %v203 = vpop.f32.mrb[0].mxu0
  %v204 = vadd.f32 0.0, %v203
  %v205 = vpop.f32.mrb[0].mxu0
  %206 = vmatprep.mubr.bf16.mxu0 0
  %207 = vmatmul.mubr.bf16.gmra.mrb[0].mxu0 %v103
  %v208 = vpop.f32.mrb[0].mxu0
  %v209 = vadd.f32 0.0, %v208
  %v210 = vpop.f32.mrb[0].mxu0
  %v211 = vpop.f32.mrb[0].mxu0
  %v212 = vadd.f32 0.0, %v211
  %v213 = vpop.f32.mrb[0].mxu0
  %214 = vmatprep.mubr.bf16.mxu0 0
  %215 = vmatmul.mubr.bf16.gmra.mrb[0].mxu0 %v104
  %v216 = vpop.f32.mrb[0].mxu0
  %v217 = vadd.f32 0.0, %v216
  %v218 = vpop.f32.mrb[0].mxu0
  %v219 = vpop.f32.mrb[0].mxu0
  %v220 = vadd.f32 0.0, %v219
  %v221 = vpop.f32.mrb[0].mxu0
  %222 = vmatprep.mubr.bf16.mxu0 0
  %223 = vmatmul.mubr.bf16.gmra.mrb[0].mxu0 %v105
  %v224 = vpop.f32.mrb[0].mxu0
  %v225 = vadd.f32 0.0, %v224
  %v226 = vpop.f32.mrb[0].mxu0
  %v227 = vpop.f32.mrb[0].mxu0
  %v228 = vadd.f32 0.0, %v227
  %v229 = vpop.f32.mrb[0].mxu0
  %230 = vmatprep.mubr.bf16.mxu0 0
  %231 = vmatmul.mubr.bf16.gmra.mrb[0].mxu0 %v106
  %v232 = vpop.f32.mrb[0].mxu0
  %v233 = vadd.f32 0.0, %v232
  %v234 = vpop.f32.mrb[0].mxu0
  %v235 = vpop.f32.mrb[0].mxu0
  %v236 = vadd.f32 0.0, %v235
  %v237 = vpop.f32.mrb[0].mxu0
  %238 = vmatprep.mubr.bf16.mxu0 0
  %239 = vmatmul.mubr.bf16.gmra.mrb[0].mxu0 %v107
  %v240 = vpop.f32.mrb[0].mxu0
  %v241 = vadd.f32 0.0, %v240
  %v242 = vpop.f32.mrb[0].mxu0
  %v243 = vpop.f32.mrb[0].mxu0
  %v244 = vadd.f32 0.0, %v243
  %v245 = vpop.f32.mrb[0].mxu0
  %246 = vmatprep.mubr.bf16.mxu0 0
  %247 = vmatmul.mubr.bf16.gmra.mrb[0].mxu0 %v108
  %v248 = vpop.f32.mrb[0].mxu0
  %v249 = vadd.f32 0.0, %v248
  %v250 = vpop.f32.mrb[0].mxu0
  %v251 = vpop.f32.mrb[0].mxu0
  %v252 = vadd.f32 0.0, %v251
  %v253 = vpop.f32.mrb[0].mxu0
  %254 = vmatprep.mubr.bf16.mxu0 0
  %255 = vmatmul.mubr.bf16.gmra.mrb[0].mxu0 %v109
  %v256 = vpop.f32.mrb[0].mxu0
  %v257 = vadd.f32 0.0, %v256
  %v258 = vpop.f32.mrb[0].mxu0
  %v259 = vpop.f32.mrb[0].mxu0
  %v260 = vadd.f32 0.0, %v259
  %v261 = vpop.f32.mrb[0].mxu0
  %262 = vdwg.mxu0
  %v263 = vld [vmem:[#allocation2] sm:$0xff]
  %v264 = vld [vmem:[#allocation2 + $0x8] sm:$0xff]
  %v265 = vld [vmem:[#allocation2 + $0x10] sm:$0xff]
  %v266 = vld [vmem:[#allocation2 + $0x18] sm:$0xff]
  %v267 = vld [vmem:[#allocation2 + $0x20] sm:$0xff]
  %v268 = vld [vmem:[#allocation2 + $0x28] sm:$0xff]
  %v269 = vld [vmem:[#allocation2 + $0x30] sm:$0xff]
  %v270 = vld [vmem:[#allocation2 + $0x38] sm:$0xff]
  %v271 = vld [vmem:[#allocation2 + $0x40] sm:$0xff]
  %v272 = vld [vmem:[#allocation2 + $0x48] sm:$0xff]
  %v273 = vld [vmem:[#allocation2 + $0x50] sm:$0xff]
  %v274 = vld [vmem:[#allocation2 + $0x58] sm:$0xff]
  %v275 = vld [vmem:[#allocation2 + $0x60] sm:$0xff]
  %v276 = vld [vmem:[#allocation2 + $0x68] sm:$0xff]
  %v277 = vld [vmem:[#allocation2 + $0x70] sm:$0xff]
  %v278 = vld [vmem:[#allocation2 + $0x78] sm:$0xff]
  %v279 = vld [vmem:[%s0] sm:$0xf]
  %v280 = vld [vmem:[%s0 + $0x4] sm:$0xf]
  %v281 = vld [vmem:[%s0 + $0x8] sm:$0xf]
  %v282 = vld [vmem:[%s0 + $0xc] sm:$0xf]
  %v283 = vld [vmem:[%s0 + $0x10] sm:$0xf]
  %v284 = vld [vmem:[%s0 + $0x14] sm:$0xf]
  %v285 = vld [vmem:[%s0 + $0x18] sm:$0xf]
  %v286 = vld [vmem:[%s0 + $0x1c] sm:$0xf]
  %v287 = vld [vmem:[%s0 + $0x20] sm:$0xf]
  %v288 = vld [vmem:[%s0 + $0x24] sm:$0xf]
  %v289 = vld [vmem:[%s0 + $0x28] sm:$0xf]
  %v290 = vld [vmem:[%s0 + $0x2c] sm:$0xf]
  %v291 = vld [vmem:[%s0 + $0x30] sm:$0xf]
  %v292 = vld [vmem:[%s0 + $0x34] sm:$0xf]
  %v293 = vld [vmem:[%s0 + $0x38] sm:$0xf]
  %v294 = vld [vmem:[%s0 + $0x3c] sm:$0xf]
  %v295 = vpack.c.bf16 %v204, %v201
  %v296 = vpack.c.bf16 %v212, %v209
  %v297 = vpack.c.bf16 %v220, %v217
  %v298 = vpack.c.bf16 %v228, %v225
  %v299 = vpack.c.bf16 %v236, %v233
  %v300 = vpack.c.bf16 %v244, %v241
  %v301 = vpack.c.bf16 %v252, %v249
  %v302 = vpack.c.bf16 %v260, %v257
  %v319 = vunpack.c.l.b16 %v279
  %v320 = vunpack.c.l.b16 %v280
  %v321 = vunpack.c.l.b16 %v281
  %v322 = vunpack.c.l.b16 %v282
  %v323 = vunpack.c.l.b16 %v283
  %v324 = vunpack.c.l.b16 %v284
  %v325 = vunpack.c.l.b16 %v285
  %v326 = vunpack.c.l.b16 %v286
  %v327 = vunpack.c.l.b16 %v287
  %v328 = vunpack.c.l.b16 %v288
  %v329 = vunpack.c.l.b16 %v289
  %v330 = vunpack.c.l.b16 %v290
  %v331 = vunpack.c.l.b16 %v291
  %v332 = vunpack.c.l.b16 %v292
  %v333 = vunpack.c.l.b16 %v293
  %v334 = vunpack.c.l.b16 %v294
  %v335 = vpack.c.b16 %v320, %v319
  %v336 = vpack.c.b16 %v322, %v321
  %v337 = vpack.c.b16 %v324, %v323
  %v338 = vpack.c.b16 %v326, %v325
  %v339 = vpack.c.b16 %v328, %v327
  %v340 = vpack.c.b16 %v330, %v329
  %v341 = vpack.c.b16 %v332, %v331
  %v342 = vpack.c.b16 %v334, %v333
  %351 = vmatprep.subr.bf16.mxu0 0
  %352 = vmatpush1.bf16.msra.mxu0 %v295
  %353 = vmatprep.subr.bf16.mxu0 0
  %354 = vmatpush1.bf16.msra.mxu0 %v296
  %355 = vmatprep.subr.bf16.mxu0 0
  %356 = vmatpush1.bf16.msra.mxu0 %v297
  %357 = vmatprep.subr.bf16.mxu0 0
  %358 = vmatpush1.bf16.msra.mxu0 %v298
  %359 = vmatprep.subr.bf16.mxu0 0
  %360 = vmatpush1.bf16.msra.mxu0 %v299
  %361 = vmatprep.subr.bf16.mxu0 0
  %362 = vmatpush1.bf16.msra.mxu0 %v300
  %363 = vmatprep.subr.bf16.mxu0 0
  %364 = vmatpush1.bf16.msra.mxu0 %v301
  %365 = vmatprep.subr.bf16.mxu0 0
  %366 = vmatpush1.bf16.msra.mxu0 %v302
  %367 = vmatprep.subr.bf16.mxu0 0
  %368 = vmatpush1.bf16.msra.mxu0 0
  %369 = vmatprep.subr.bf16.mxu0 0
  %370 = vmatpush1.bf16.msra.mxu0 0
  %371 = vmatprep.subr.bf16.mxu0 0
  %372 = vmatpush1.bf16.msra.mxu0 0
  %373 = vmatprep.subr.bf16.mxu0 0
  %374 = vmatpush1.bf16.msra.mxu0 0
  %375 = vmatprep.subr.bf16.mxu0 0
  %376 = vmatpush1.bf16.msra.mxu0 0
  %377 = vmatprep.subr.bf16.mxu0 0
  %378 = vmatpush1.bf16.msra.mxu0 0
  %379 = vmatprep.subr.bf16.mxu0 0
  %380 = vmatpush1.bf16.msra.mxu0 0
  %381 = vmatprep.subr.bf16.mxu0 0
  %382 = vmatpush1.bf16.msra.mxu0 0
  %383 = vmatprep.mubr.bf16.mxu0 0
  %384 = vmatmul.mubr.bf16.gmra.mrb[0].mxu0 %v335
  %v385 = vpop.f32.mrb[0].mxu0
  %v386 = vadd.f32 0.0, %v385
  %v387 = vpop.f32.mrb[0].mxu0
  %v388 = vpop.f32.mrb[0].mxu0
  %v389 = vadd.f32 0.0, %v388
  %v390 = vpop.f32.mrb[0].mxu0
  %391 = vmatprep.mubr.bf16.mxu0 0
  %392 = vmatmul.mubr.bf16.gmra.mrb[0].mxu0 %v336
  %v393 = vpop.f32.mrb[0].mxu0
  %v394 = vadd.f32 0.0, %v393
  %v395 = vpop.f32.mrb[0].mxu0
  %v396 = vpop.f32.mrb[0].mxu0
  %v397 = vadd.f32 0.0, %v396
  %v398 = vpop.f32.mrb[0].mxu0
  %399 = vmatprep.mubr.bf16.mxu0 0
  %400 = vmatmul.mubr.bf16.gmra.mrb[0].mxu0 %v337
  %v401 = vpop.f32.mrb[0].mxu0
  %v402 = vadd.f32 0.0, %v401
  %v403 = vpop.f32.mrb[0].mxu0
  %v404 = vpop.f32.mrb[0].mxu0
  %v405 = vadd.f32 0.0, %v404
  %v406 = vpop.f32.mrb[0].mxu0
  %407 = vmatprep.mubr.bf16.mxu0 0
  %408 = vmatmul.mubr.bf16.gmra.mrb[0].mxu0 %v338
  %v409 = vpop.f32.mrb[0].mxu0
  %v410 = vadd.f32 0.0, %v409
  %v411 = vpop.f32.mrb[0].mxu0
  %v412 = vpop.f32.mrb[0].mxu0
  %v413 = vadd.f32 0.0, %v412
  %v414 = vpop.f32.mrb[0].mxu0
  %415 = vmatprep.mubr.bf16.mxu0 0
  %416 = vmatmul.mubr.bf16.gmra.mrb[0].mxu0 %v339
  %v417 = vpop.f32.mrb[0].mxu0
  %v418 = vadd.f32 0.0, %v417
  %v419 = vpop.f32.mrb[0].mxu0
  %v420 = vpop.f32.mrb[0].mxu0
  %v421 = vadd.f32 0.0, %v420
  %v422 = vpop.f32.mrb[0].mxu0
  %423 = vmatprep.mubr.bf16.mxu0 0
  %424 = vmatmul.mubr.bf16.gmra.mrb[0].mxu0 %v340
  %v425 = vpop.f32.mrb[0].mxu0
  %v426 = vadd.f32 0.0, %v425
  %v427 = vpop.f32.mrb[0].mxu0
  %v428 = vpop.f32.mrb[0].mxu0
  %v429 = vadd.f32 0.0, %v428
  %v430 = vpop.f32.mrb[0].mxu0
  %431 = vmatprep.mubr.bf16.mxu0 0
  %432 = vmatmul.mubr.bf16.gmra.mrb[0].mxu0 %v341
  %v433 = vpop.f32.mrb[0].mxu0
  %v434 = vadd.f32 0.0, %v433
  %v435 = vpop.f32.mrb[0].mxu0
  %v436 = vpop.f32.mrb[0].mxu0
  %v437 = vadd.f32 0.0, %v436
  %v438 = vpop.f32.mrb[0].mxu0
  %439 = vmatprep.mubr.bf16.mxu0 0
  %440 = vmatmul.mubr.bf16.gmra.mrb[0].mxu0 %v342
  %v441 = vpop.f32.mrb[0].mxu0
  %v442 = vadd.f32 0.0, %v441
  %v443 = vpop.f32.mrb[0].mxu0
  %v444 = vpop.f32.mrb[0].mxu0
  %v445 = vadd.f32 0.0, %v444
  %v446 = vpop.f32.mrb[0].mxu0
  %447 = vdwg.mxu0
  %v448 = vadd.f32 %v263, %v386
  %v449 = vadd.f32 %v264, %v389
  %v450 = vadd.f32 %v265, %v394
  %v451 = vadd.f32 %v266, %v397
  %v452 = vadd.f32 %v267, %v402
  %v453 = vadd.f32 %v268, %v405
  %v454 = vadd.f32 %v269, %v410
  %v455 = vadd.f32 %v270, %v413
  %v456 = vadd.f32 %v271, %v418
  %v457 = vadd.f32 %v272, %v421
  %v458 = vadd.f32 %v273, %v426
  %v459 = vadd.f32 %v274, %v429
  %v460 = vadd.f32 %v275, %v434
  %v461 = vadd.f32 %v276, %v437
  %v462 = vadd.f32 %v277, %v442
  %v463 = vadd.f32 %v278, %v445
  %464 = vst [vmem:[#allocation2] sm:$0xff] %v448
  %465 = vst [vmem:[#allocation2 + $0x8] sm:$0xff] %v449
  %466 = vst [vmem:[#allocation2 + $0x10] sm:$0xff] %v450
  %467 = vst [vmem:[#allocation2 + $0x18] sm:$0xff] %v451
  %468 = vst [vmem:[#allocation2 + $0x20] sm:$0xff] %v452
  %469 = vst [vmem:[#allocation2 + $0x28] sm:$0xff] %v453
  %470 = vst [vmem:[#allocation2 + $0x30] sm:$0xff] %v454
  %471 = vst [vmem:[#allocation2 + $0x38] sm:$0xff] %v455
  %472 = vst [vmem:[#allocation2 + $0x40] sm:$0xff] %v456
  %473 = vst [vmem:[#allocation2 + $0x48] sm:$0xff] %v457
  %474 = vst [vmem:[#allocation2 + $0x50] sm:$0xff] %v458
  %475 = vst [vmem:[#allocation2 + $0x58] sm:$0xff] %v459
  %476 = vst [vmem:[#allocation2 + $0x60] sm:$0xff] %v460
  %477 = vst [vmem:[#allocation2 + $0x68] sm:$0xff] %v461
  %478 = vst [vmem:[#allocation2 + $0x70] sm:$0xff] %v462
  %479 = vst [vmem:[#allocation2 + $0x78] sm:$0xff] %v463
  // Predicated region
  $region22: #{link_predictor_forward.4} parent=0 // pred_check
    %p480 = pneg %p18
  $region23: #{link_predictor_forward.4} parent=0 // pred_check_branch
    %482 = sbr.rel (%p480) target = $region25
  $region24: #{link_predictor_forward.4} parent=0 // pred_region
    %v483 = vld [vmem:[#allocation2] sm:$0xff]
    %v484 = vld [vmem:[#allocation2 + $0x8] sm:$0xff]
    %v485 = vld [vmem:[#allocation2 + $0x10] sm:$0xff]
    %v486 = vld [vmem:[#allocation2 + $0x18] sm:$0xff]
    %v487 = vld [vmem:[#allocation2 + $0x20] sm:$0xff]
    %v488 = vld [vmem:[#allocation2 + $0x28] sm:$0xff]
    %v489 = vld [vmem:[#allocation2 + $0x30] sm:$0xff]
    %v490 = vld [vmem:[#allocation2 + $0x38] sm:$0xff]
    %v491 = vld [vmem:[#allocation2 + $0x40] sm:$0xff]
    %v492 = vld [vmem:[#allocation2 + $0x48] sm:$0xff]
    %v493 = vld [vmem:[#allocation2 + $0x50] sm:$0xff]
    %v494 = vld [vmem:[#allocation2 + $0x58] sm:$0xff]
    %v495 = vld [vmem:[#allocation2 + $0x60] sm:$0xff]
    %v496 = vld [vmem:[#allocation2 + $0x68] sm:$0xff]
    %v497 = vld [vmem:[#allocation2 + $0x70] sm:$0xff]
    %v498 = vld [vmem:[#allocation2 + $0x78] sm:$0xff]
    %v499 = vld [vmem:[%s3] sm:$0x1]
    %v501 = vlaneseq
    %v502 = vshrl.u32 %v501, 7
    %v503 = vsub.s32 0, %v502
    %v504 = vrot.slane %v499, %v503
    %v506 = vadd.f32 %v483, %v504
    %v507 = vadd.f32 %v484, %v504
    %v508 = vadd.f32 %v485, %v504
    %v509 = vadd.f32 %v486, %v504
    %v510 = vadd.f32 %v487, %v504
    %v511 = vadd.f32 %v488, %v504
    %v512 = vadd.f32 %v489, %v504
    %v513 = vadd.f32 %v490, %v504
    %v514 = vadd.f32 %v491, %v504
    %v515 = vadd.f32 %v492, %v504
    %v516 = vadd.f32 %v493, %v504
    %v517 = vadd.f32 %v494, %v504
    %v518 = vadd.f32 %v495, %v504
    %v519 = vadd.f32 %v496, %v504
    %v520 = vadd.f32 %v497, %v504
    %v521 = vadd.f32 %v498, %v504
    %522 = vst [vmem:[%s4] sm:$0xff] %v506
    %523 = vst [vmem:[%s4 + $0x8] sm:$0xff] %v507
    %524 = vst [vmem:[%s4 + $0x10] sm:$0xff] %v508
    %525 = vst [vmem:[%s4 + $0x18] sm:$0xff] %v509
    %526 = vst [vmem:[%s4 + $0x20] sm:$0xff] %v510
    %527 = vst [vmem:[%s4 + $0x28] sm:$0xff] %v511
    %528 = vst [vmem:[%s4 + $0x30] sm:$0xff] %v512
    %529 = vst [vmem:[%s4 + $0x38] sm:$0xff] %v513
    %530 = vst [vmem:[%s4 + $0x40] sm:$0xff] %v514
    %531 = vst [vmem:[%s4 + $0x48] sm:$0xff] %v515
    %532 = vst [vmem:[%s4 + $0x50] sm:$0xff] %v516
    %533 = vst [vmem:[%s4 + $0x58] sm:$0xff] %v517
    %534 = vst [vmem:[%s4 + $0x60] sm:$0xff] %v518
    %535 = vst [vmem:[%s4 + $0x68] sm:$0xff] %v519
    %536 = vst [vmem:[%s4 + $0x70] sm:$0xff] %v520
    %537 = vst [vmem:[%s4 + $0x78] sm:$0xff] %v521
  $region25: #{link_predictor_forward.4} parent=0 // pred_fallthru
    _
  // Predicated region
  $region26: #{link_predictor_forward.4} parent=0 // pred_check
    _
  $region27: #{link_predictor_forward.4} parent=0 // pred_check_branch
    %539 = sbr.rel (0) target = $region29
  $region28: #{link_predictor_forward.4} parent=0 // pred_region
    _
  $region29: #{link_predictor_forward.4} parent=0 // pred_fallthru
    _
  // Predicated region
  $region30: #{link_predictor_forward.4} parent=0 // pred_check
    _
  $region31: #{link_predictor_forward.4} parent=0 // pred_check_branch
    %541 = sbr.rel (0) target = $region33
  $region32: #{link_predictor_forward.4} parent=0 // pred_region
    _
  $region33: #{link_predictor_forward.4} parent=0 // pred_fallthru
    _

// kernel: link_predictor_forward.3
$region0: #{link_predictor_forward.3}
  #allocation0 [shape = 'u32[]', space=smem, size = 0x4, offset = 0x4, fixed_abs, tag = 'smem constant byte address 0x4 - core index']
  #allocation1 [shape = 'u32[144,128]{1,0:T(1,128)}', space=vmem, size = 0x12000, scoped, tag = 'internal scratch']
  #allocation2 [shape = 'f32[128,128]{1,0:T(8,128)}', space=vmem, size = 0x10000, scoped, tag = 'scratch operand']
  %s0 = inlined_call_operand.vmem [shape: bf16[128,128], index: 0, kind: input, shape index: {}]
  %s1 = inlined_call_operand.vmem [shape: bf16[128,128], index: 1, kind: input, shape index: {}]
  %s2 = inlined_call_operand.vmem [shape: bf16[128,128], index: 2, kind: input, shape index: {}]
  %s3 = inlined_call_operand.vmem [shape: f32[1,128], index: 3, kind: input, shape index: {}]
  %s4 = inlined_call_operand.vmem [shape: bf16[128,128], index: 4, kind: output, shape index: {}]
  %s5 = sld [smem:[#allocation0]]
  $region34: #{link_predictor_forward.3} parent=0
    _
  %s7 = ssub.s32 1, %s5
  %s8 = scalar_select 0, %s7, %s5
  // Predicated region
  $region2: #{link_predictor_forward.3} parent=0 // pred_check
    _
  $region3: #{link_predictor_forward.3} parent=0 // pred_check_branch
    %10 = sbr.rel (0) target = $region5
  $region4: #{link_predictor_forward.3} parent=0 // pred_region
    _
  $region5: #{link_predictor_forward.3} parent=0 // pred_fallthru
    _
  // Predicated region
  $region6: #{link_predictor_forward.3} parent=0 // pred_check
    _
  $region7: #{link_predictor_forward.3} parent=0 // pred_check_branch
    %12 = sbr.rel (0) target = $region9
  $region8: #{link_predictor_forward.3} parent=0 // pred_region
    _
  $region9: #{link_predictor_forward.3} parent=0 // pred_fallthru
    _
  // Predicated region
  $region10: #{link_predictor_forward.3} parent=0 // pred_check
    _
  $region11: #{link_predictor_forward.3} parent=0 // pred_check_branch
    %14 = sbr.rel (0) target = $region13
  $region12: #{link_predictor_forward.3} parent=0 // pred_region
    _
  $region13: #{link_predictor_forward.3} parent=0 // pred_fallthru
    _
  // Predicated region
  $region14: #{link_predictor_forward.3} parent=0 // pred_check
    _
  $region15: #{link_predictor_forward.3} parent=0 // pred_check_branch
    %16 = sbr.rel (0) target = $region17
  $region16: #{link_predictor_forward.3} parent=0 // pred_region
    _
  $region17: #{link_predictor_forward.3} parent=0 // pred_fallthru
    _
  %p18 = scmp.eq.s32.totalorder 0, 0
  // Predicated region
  $region18: #{link_predictor_forward.3} parent=0 // pred_check
    %p19 = pneg %p18
  $region19: #{link_predictor_forward.3} parent=0 // pred_check_branch
    %21 = sbr.rel (%p19) target = $region21
  $region20: #{link_predictor_forward.3} parent=0 // pred_region
    %22 = vst [vmem:[#allocation2] sm:$0xff] 0.0
    %23 = vst [vmem:[#allocation2 + $0x8] sm:$0xff] 0.0
    %24 = vst [vmem:[#allocation2 + $0x10] sm:$0xff] 0.0
    %25 = vst [vmem:[#allocation2 + $0x18] sm:$0xff] 0.0
    %26 = vst [vmem:[#allocation2 + $0x20] sm:$0xff] 0.0
    %27 = vst [vmem:[#allocation2 + $0x28] sm:$0xff] 0.0
    %28 = vst [vmem:[#allocation2 + $0x30] sm:$0xff] 0.0
    %29 = vst [vmem:[#allocation2 + $0x38] sm:$0xff] 0.0
    %30 = vst [vmem:[#allocation2 + $0x40] sm:$0xff] 0.0
    %31 = vst [vmem:[#allocation2 + $0x48] sm:$0xff] 0.0
    %32 = vst [vmem:[#allocation2 + $0x50] sm:$0xff] 0.0
    %33 = vst [vmem:[#allocation2 + $0x58] sm:$0xff] 0.0
    %34 = vst [vmem:[#allocation2 + $0x60] sm:$0xff] 0.0
    %35 = vst [vmem:[#allocation2 + $0x68] sm:$0xff] 0.0
    %36 = vst [vmem:[#allocation2 + $0x70] sm:$0xff] 0.0
    %37 = vst [vmem:[#allocation2 + $0x78] sm:$0xff] 0.0
  $region21: #{link_predictor_forward.3} parent=0 // pred_fallthru
    _
  %v38 = vld [vmem:[%s1] sm:$0xf]
  %v39 = vld [vmem:[%s1 + $0x4] sm:$0xf]
  %v40 = vld [vmem:[%s1 + $0x8] sm:$0xf]
  %v41 = vld [vmem:[%s1 + $0xc] sm:$0xf]
  %v42 = vld [vmem:[%s1 + $0x10] sm:$0xf]
  %v43 = vld [vmem:[%s1 + $0x14] sm:$0xf]
  %v44 = vld [vmem:[%s1 + $0x18] sm:$0xf]
  %v45 = vld [vmem:[%s1 + $0x1c] sm:$0xf]
  %v46 = vld [vmem:[%s1 + $0x20] sm:$0xf]
  %v47 = vld [vmem:[%s1 + $0x24] sm:$0xf]
  %v48 = vld [vmem:[%s1 + $0x28] sm:$0xf]
  %v49 = vld [vmem:[%s1 + $0x2c] sm:$0xf]
  %v50 = vld [vmem:[%s1 + $0x30] sm:$0xf]
  %v51 = vld [vmem:[%s1 + $0x34] sm:$0xf]
  %v52 = vld [vmem:[%s1 + $0x38] sm:$0xf]
  %v53 = vld [vmem:[%s1 + $0x3c] sm:$0xf]
  %v54 = vld [vmem:[%s2] sm:$0xf]
  %v55 = vld [vmem:[%s2 + $0x4] sm:$0xf]
  %v56 = vld [vmem:[%s2 + $0x8] sm:$0xf]
  %v57 = vld [vmem:[%s2 + $0xc] sm:$0xf]
  %v58 = vld [vmem:[%s2 + $0x10] sm:$0xf]
  %v59 = vld [vmem:[%s2 + $0x14] sm:$0xf]
  %v60 = vld [vmem:[%s2 + $0x18] sm:$0xf]
  %v61 = vld [vmem:[%s2 + $0x1c] sm:$0xf]
  %v62 = vld [vmem:[%s2 + $0x20] sm:$0xf]
  %v63 = vld [vmem:[%s2 + $0x24] sm:$0xf]
  %v64 = vld [vmem:[%s2 + $0x28] sm:$0xf]
  %v65 = vld [vmem:[%s2 + $0x2c] sm:$0xf]
  %v66 = vld [vmem:[%s2 + $0x30] sm:$0xf]
  %v67 = vld [vmem:[%s2 + $0x34] sm:$0xf]
  %v68 = vld [vmem:[%s2 + $0x38] sm:$0xf]
  %v69 = vld [vmem:[%s2 + $0x3c] sm:$0xf]
  %v86 = vunpack.c.l.b16 %v38
  %v87 = vunpack.c.l.b16 %v39
  %v88 = vunpack.c.l.b16 %v40
  %v89 = vunpack.c.l.b16 %v41
  %v90 = vunpack.c.l.b16 %v42
  %v91 = vunpack.c.l.b16 %v43
  %v92 = vunpack.c.l.b16 %v44
  %v93 = vunpack.c.l.b16 %v45
  %v94 = vunpack.c.l.b16 %v46
  %v95 = vunpack.c.l.b16 %v47
  %v96 = vunpack.c.l.b16 %v48
  %v97 = vunpack.c.l.b16 %v49
  %v98 = vunpack.c.l.b16 %v50
  %v99 = vunpack.c.l.b16 %v51
  %v100 = vunpack.c.l.b16 %v52
  %v101 = vunpack.c.l.b16 %v53
  %v102 = vpack.c.b16 %v87, %v86
  %v103 = vpack.c.b16 %v89, %v88
  %v104 = vpack.c.b16 %v91, %v90
  %v105 = vpack.c.b16 %v93, %v92
  %v106 = vpack.c.b16 %v95, %v94
  %v107 = vpack.c.b16 %v97, %v96
  %v108 = vpack.c.b16 %v99, %v98
  %v109 = vpack.c.b16 %v101, %v100
  %v134 = vunpack.c.l.b16 %v54
  %v135 = vunpack.c.l.b16 %v55
  %v136 = vunpack.c.l.b16 %v56
  %v137 = vunpack.c.l.b16 %v57
  %v138 = vunpack.c.l.b16 %v58
  %v139 = vunpack.c.l.b16 %v59
  %v140 = vunpack.c.l.b16 %v60
  %v141 = vunpack.c.l.b16 %v61
  %v142 = vunpack.c.l.b16 %v62
  %v143 = vunpack.c.l.b16 %v63
  %v144 = vunpack.c.l.b16 %v64
  %v145 = vunpack.c.l.b16 %v65
  %v146 = vunpack.c.l.b16 %v66
  %v147 = vunpack.c.l.b16 %v67
  %v148 = vunpack.c.l.b16 %v68
  %v149 = vunpack.c.l.b16 %v69
  %v150 = vpack.c.b16 %v135, %v134
  %v151 = vpack.c.b16 %v137, %v136
  %v152 = vpack.c.b16 %v139, %v138
  %v153 = vpack.c.b16 %v141, %v140
  %v154 = vpack.c.b16 %v143, %v142
  %v155 = vpack.c.b16 %v145, %v144
  %v156 = vpack.c.b16 %v147, %v146
  %v157 = vpack.c.b16 %v149, %v148
  %166 = vmatprep.subr.bf16.mxu0 0
  %167 = vmatpush1.bf16.msra.mxu0 %v150
  %168 = vmatprep.subr.bf16.mxu0 0
  %169 = vmatpush1.bf16.msra.mxu0 %v151
  %170 = vmatprep.subr.bf16.mxu0 0
  %171 = vmatpush1.bf16.msra.mxu0 %v152
  %172 = vmatprep.subr.bf16.mxu0 0
  %173 = vmatpush1.bf16.msra.mxu0 %v153
  %174 = vmatprep.subr.bf16.mxu0 0
  %175 = vmatpush1.bf16.msra.mxu0 %v154
  %176 = vmatprep.subr.bf16.mxu0 0
  %177 = vmatpush1.bf16.msra.mxu0 %v155
  %178 = vmatprep.subr.bf16.mxu0 0
  %179 = vmatpush1.bf16.msra.mxu0 %v156
  %180 = vmatprep.subr.bf16.mxu0 0
  %181 = vmatpush1.bf16.msra.mxu0 %v157
  %182 = vmatprep.subr.bf16.mxu0 0
  %183 = vmatpush1.bf16.msra.mxu0 0
  %184 = vmatprep.subr.bf16.mxu0 0
  %185 = vmatpush1.bf16.msra.mxu0 0
  %186 = vmatprep.subr.bf16.mxu0 0
  %187 = vmatpush1.bf16.msra.mxu0 0
  %188 = vmatprep.subr.bf16.mxu0 0
  %189 = vmatpush1.bf16.msra.mxu0 0
  %190 = vmatprep.subr.bf16.mxu0 0
  %191 = vmatpush1.bf16.msra.mxu0 0
  %192 = vmatprep.subr.bf16.mxu0 0
  %193 = vmatpush1.bf16.msra.mxu0 0
  %194 = vmatprep.subr.bf16.mxu0 0
  %195 = vmatpush1.bf16.msra.mxu0 0
  %196 = vmatprep.subr.bf16.mxu0 0
  %197 = vmatpush1.bf16.msra.mxu0 0
  %198 = vmatprep.mubr.bf16.mxu0 0
  %199 = vmatmul.mubr.bf16.gmra.mrb[0].mxu0 %v102
  %v200 = vpop.f32.mrb[0].mxu0
  %v201 = vadd.f32 0.0, %v200
  %v202 = vpop.f32.mrb[0].mxu0
  %v203 = vpop.f32.mrb[0].mxu0
  %v204 = vadd.f32 0.0, %v203
  %v205 = vpop.f32.mrb[0].mxu0
  %206 = vmatprep.mubr.bf16.mxu0 0
  %207 = vmatmul.mubr.bf16.gmra.mrb[0].mxu0 %v103
  %v208 = vpop.f32.mrb[0].mxu0
  %v209 = vadd.f32 0.0, %v208
  %v210 = vpop.f32.mrb[0].mxu0
  %v211 = vpop.f32.mrb[0].mxu0
  %v212 = vadd.f32 0.0, %v211
  %v213 = vpop.f32.mrb[0].mxu0
  %214 = vmatprep.mubr.bf16.mxu0 0
  %215 = vmatmul.mubr.bf16.gmra.mrb[0].mxu0 %v104
  %v216 = vpop.f32.mrb[0].mxu0
  %v217 = vadd.f32 0.0, %v216
  %v218 = vpop.f32.mrb[0].mxu0
  %v219 = vpop.f32.mrb[0].mxu0
  %v220 = vadd.f32 0.0, %v219
  %v221 = vpop.f32.mrb[0].mxu0
  %222 = vmatprep.mubr.bf16.mxu0 0
  %223 = vmatmul.mubr.bf16.gmra.mrb[0].mxu0 %v105
  %v224 = vpop.f32.mrb[0].mxu0
  %v225 = vadd.f32 0.0, %v224
  %v226 = vpop.f32.mrb[0].mxu0
  %v227 = vpop.f32.mrb[0].mxu0
  %v228 = vadd.f32 0.0, %v227
  %v229 = vpop.f32.mrb[0].mxu0
  %230 = vmatprep.mubr.bf16.mxu0 0
  %231 = vmatmul.mubr.bf16.gmra.mrb[0].mxu0 %v106
  %v232 = vpop.f32.mrb[0].mxu0
  %v233 = vadd.f32 0.0, %v232
  %v234 = vpop.f32.mrb[0].mxu0
  %v235 = vpop.f32.mrb[0].mxu0
  %v236 = vadd.f32 0.0, %v235
  %v237 = vpop.f32.mrb[0].mxu0
  %238 = vmatprep.mubr.bf16.mxu0 0
  %239 = vmatmul.mubr.bf16.gmra.mrb[0].mxu0 %v107
  %v240 = vpop.f32.mrb[0].mxu0
  %v241 = vadd.f32 0.0, %v240
  %v242 = vpop.f32.mrb[0].mxu0
  %v243 = vpop.f32.mrb[0].mxu0
  %v244 = vadd.f32 0.0, %v243
  %v245 = vpop.f32.mrb[0].mxu0
  %246 = vmatprep.mubr.bf16.mxu0 0
  %247 = vmatmul.mubr.bf16.gmra.mrb[0].mxu0 %v108
  %v248 = vpop.f32.mrb[0].mxu0
  %v249 = vadd.f32 0.0, %v248
  %v250 = vpop.f32.mrb[0].mxu0
  %v251 = vpop.f32.mrb[0].mxu0
  %v252 = vadd.f32 0.0, %v251
  %v253 = vpop.f32.mrb[0].mxu0
  %254 = vmatprep.mubr.bf16.mxu0 0
  %255 = vmatmul.mubr.bf16.gmra.mrb[0].mxu0 %v109
  %v256 = vpop.f32.mrb[0].mxu0
  %v257 = vadd.f32 0.0, %v256
  %v258 = vpop.f32.mrb[0].mxu0
  %v259 = vpop.f32.mrb[0].mxu0
  %v260 = vadd.f32 0.0, %v259
  %v261 = vpop.f32.mrb[0].mxu0
  %262 = vdwg.mxu0
  %v263 = vld [vmem:[#allocation2] sm:$0xff]
  %v264 = vld [vmem:[#allocation2 + $0x8] sm:$0xff]
  %v265 = vld [vmem:[#allocation2 + $0x10] sm:$0xff]
  %v266 = vld [vmem:[#allocation2 + $0x18] sm:$0xff]
  %v267 = vld [vmem:[#allocation2 + $0x20] sm:$0xff]
  %v268 = vld [vmem:[#allocation2 + $0x28] sm:$0xff]
  %v269 = vld [vmem:[#allocation2 + $0x30] sm:$0xff]
  %v270 = vld [vmem:[#allocation2 + $0x38] sm:$0xff]
  %v271 = vld [vmem:[#allocation2 + $0x40] sm:$0xff]
  %v272 = vld [vmem:[#allocation2 + $0x48] sm:$0xff]
  %v273 = vld [vmem:[#allocation2 + $0x50] sm:$0xff]
  %v274 = vld [vmem:[#allocation2 + $0x58] sm:$0xff]
  %v275 = vld [vmem:[#allocation2 + $0x60] sm:$0xff]
  %v276 = vld [vmem:[#allocation2 + $0x68] sm:$0xff]
  %v277 = vld [vmem:[#allocation2 + $0x70] sm:$0xff]
  %v278 = vld [vmem:[#allocation2 + $0x78] sm:$0xff]
  %v279 = vld [vmem:[%s0] sm:$0xf]
  %v280 = vld [vmem:[%s0 + $0x4] sm:$0xf]
  %v281 = vld [vmem:[%s0 + $0x8] sm:$0xf]
  %v282 = vld [vmem:[%s0 + $0xc] sm:$0xf]
  %v283 = vld [vmem:[%s0 + $0x10] sm:$0xf]
  %v284 = vld [vmem:[%s0 + $0x14] sm:$0xf]
  %v285 = vld [vmem:[%s0 + $0x18] sm:$0xf]
  %v286 = vld [vmem:[%s0 + $0x1c] sm:$0xf]
  %v287 = vld [vmem:[%s0 + $0x20] sm:$0xf]
  %v288 = vld [vmem:[%s0 + $0x24] sm:$0xf]
  %v289 = vld [vmem:[%s0 + $0x28] sm:$0xf]
  %v290 = vld [vmem:[%s0 + $0x2c] sm:$0xf]
  %v291 = vld [vmem:[%s0 + $0x30] sm:$0xf]
  %v292 = vld [vmem:[%s0 + $0x34] sm:$0xf]
  %v293 = vld [vmem:[%s0 + $0x38] sm:$0xf]
  %v294 = vld [vmem:[%s0 + $0x3c] sm:$0xf]
  %v295 = vpack.c.bf16 %v204, %v201
  %v296 = vpack.c.bf16 %v212, %v209
  %v297 = vpack.c.bf16 %v220, %v217
  %v298 = vpack.c.bf16 %v228, %v225
  %v299 = vpack.c.bf16 %v236, %v233
  %v300 = vpack.c.bf16 %v244, %v241
  %v301 = vpack.c.bf16 %v252, %v249
  %v302 = vpack.c.bf16 %v260, %v257
  %v319 = vunpack.c.l.b16 %v279
  %v320 = vunpack.c.l.b16 %v280
  %v321 = vunpack.c.l.b16 %v281
  %v322 = vunpack.c.l.b16 %v282
  %v323 = vunpack.c.l.b16 %v283
  %v324 = vunpack.c.l.b16 %v284
  %v325 = vunpack.c.l.b16 %v285
  %v326 = vunpack.c.l.b16 %v286
  %v327 = vunpack.c.l.b16 %v287
  %v328 = vunpack.c.l.b16 %v288
  %v329 = vunpack.c.l.b16 %v289
  %v330 = vunpack.c.l.b16 %v290
  %v331 = vunpack.c.l.b16 %v291
  %v332 = vunpack.c.l.b16 %v292
  %v333 = vunpack.c.l.b16 %v293
  %v334 = vunpack.c.l.b16 %v294
  %v335 = vpack.c.b16 %v320, %v319
  %v336 = vpack.c.b16 %v322, %v321
  %v337 = vpack.c.b16 %v324, %v323
  %v338 = vpack.c.b16 %v326, %v325
  %v339 = vpack.c.b16 %v328, %v327
  %v340 = vpack.c.b16 %v330, %v329
  %v341 = vpack.c.b16 %v332, %v331
  %v342 = vpack.c.b16 %v334, %v333
  %351 = vmatprep.subr.bf16.mxu0 0
  %352 = vmatpush1.bf16.msra.mxu0 %v295
  %353 = vmatprep.subr.bf16.mxu0 0
  %354 = vmatpush1.bf16.msra.mxu0 %v296
  %355 = vmatprep.subr.bf16.mxu0 0
  %356 = vmatpush1.bf16.msra.mxu0 %v297
  %357 = vmatprep.subr.bf16.mxu0 0
  %358 = vmatpush1.bf16.msra.mxu0 %v298
  %359 = vmatprep.subr.bf16.mxu0 0
  %360 = vmatpush1.bf16.msra.mxu0 %v299
  %361 = vmatprep.subr.bf16.mxu0 0
  %362 = vmatpush1.bf16.msra.mxu0 %v300
  %363 = vmatprep.subr.bf16.mxu0 0
  %364 = vmatpush1.bf16.msra.mxu0 %v301
  %365 = vmatprep.subr.bf16.mxu0 0
  %366 = vmatpush1.bf16.msra.mxu0 %v302
  %367 = vmatprep.subr.bf16.mxu0 0
  %368 = vmatpush1.bf16.msra.mxu0 0
  %369 = vmatprep.subr.bf16.mxu0 0
  %370 = vmatpush1.bf16.msra.mxu0 0
  %371 = vmatprep.subr.bf16.mxu0 0
  %372 = vmatpush1.bf16.msra.mxu0 0
  %373 = vmatprep.subr.bf16.mxu0 0
  %374 = vmatpush1.bf16.msra.mxu0 0
  %375 = vmatprep.subr.bf16.mxu0 0
  %376 = vmatpush1.bf16.msra.mxu0 0
  %377 = vmatprep.subr.bf16.mxu0 0
  %378 = vmatpush1.bf16.msra.mxu0 0
  %379 = vmatprep.subr.bf16.mxu0 0
  %380 = vmatpush1.bf16.msra.mxu0 0
  %381 = vmatprep.subr.bf16.mxu0 0
  %382 = vmatpush1.bf16.msra.mxu0 0
  %383 = vmatprep.mubr.bf16.mxu0 0
  %384 = vmatmul.mubr.bf16.gmra.mrb[0].mxu0 %v335
  %v385 = vpop.f32.mrb[0].mxu0
  %v386 = vadd.f32 0.0, %v385
  %v387 = vpop.f32.mrb[0].mxu0
  %v388 = vpop.f32.mrb[0].mxu0
  %v389 = vadd.f32 0.0, %v388
  %v390 = vpop.f32.mrb[0].mxu0
  %391 = vmatprep.mubr.bf16.mxu0 0
  %392 = vmatmul.mubr.bf16.gmra.mrb[0].mxu0 %v336
  %v393 = vpop.f32.mrb[0].mxu0
  %v394 = vadd.f32 0.0, %v393
  %v395 = vpop.f32.mrb[0].mxu0
  %v396 = vpop.f32.mrb[0].mxu0
  %v397 = vadd.f32 0.0, %v396
  %v398 = vpop.f32.mrb[0].mxu0
  %399 = vmatprep.mubr.bf16.mxu0 0
  %400 = vmatmul.mubr.bf16.gmra.mrb[0].mxu0 %v337
  %v401 = vpop.f32.mrb[0].mxu0
  %v402 = vadd.f32 0.0, %v401
  %v403 = vpop.f32.mrb[0].mxu0
  %v404 = vpop.f32.mrb[0].mxu0
  %v405 = vadd.f32 0.0, %v404
  %v406 = vpop.f32.mrb[0].mxu0
  %407 = vmatprep.mubr.bf16.mxu0 0
  %408 = vmatmul.mubr.bf16.gmra.mrb[0].mxu0 %v338
  %v409 = vpop.f32.mrb[0].mxu0
  %v410 = vadd.f32 0.0, %v409
  %v411 = vpop.f32.mrb[0].mxu0
  %v412 = vpop.f32.mrb[0].mxu0
  %v413 = vadd.f32 0.0, %v412
  %v414 = vpop.f32.mrb[0].mxu0
  %415 = vmatprep.mubr.bf16.mxu0 0
  %416 = vmatmul.mubr.bf16.gmra.mrb[0].mxu0 %v339
  %v417 = vpop.f32.mrb[0].mxu0
  %v418 = vadd.f32 0.0, %v417
  %v419 = vpop.f32.mrb[0].mxu0
  %v420 = vpop.f32.mrb[0].mxu0
  %v421 = vadd.f32 0.0, %v420
  %v422 = vpop.f32.mrb[0].mxu0
  %423 = vmatprep.mubr.bf16.mxu0 0
  %424 = vmatmul.mubr.bf16.gmra.mrb[0].mxu0 %v340
  %v425 = vpop.f32.mrb[0].mxu0
  %v426 = vadd.f32 0.0, %v425
  %v427 = vpop.f32.mrb[0].mxu0
  %v428 = vpop.f32.mrb[0].mxu0
  %v429 = vadd.f32 0.0, %v428
  %v430 = vpop.f32.mrb[0].mxu0
  %431 = vmatprep.mubr.bf16.mxu0 0
  %432 = vmatmul.mubr.bf16.gmra.mrb[0].mxu0 %v341
  %v433 = vpop.f32.mrb[0].mxu0
  %v434 = vadd.f32 0.0, %v433
  %v435 = vpop.f32.mrb[0].mxu0
  %v436 = vpop.f32.mrb[0].mxu0
  %v437 = vadd.f32 0.0, %v436
  %v438 = vpop.f32.mrb[0].mxu0
  %439 = vmatprep.mubr.bf16.mxu0 0
  %440 = vmatmul.mubr.bf16.gmra.mrb[0].mxu0 %v342
  %v441 = vpop.f32.mrb[0].mxu0
  %v442 = vadd.f32 0.0, %v441
  %v443 = vpop.f32.mrb[0].mxu0
  %v444 = vpop.f32.mrb[0].mxu0
  %v445 = vadd.f32 0.0, %v444
  %v446 = vpop.f32.mrb[0].mxu0
  %447 = vdwg.mxu0
  %v448 = vadd.f32 %v263, %v386
  %v449 = vadd.f32 %v264, %v389
  %v450 = vadd.f32 %v265, %v394
  %v451 = vadd.f32 %v266, %v397
  %v452 = vadd.f32 %v267, %v402
  %v453 = vadd.f32 %v268, %v405
  %v454 = vadd.f32 %v269, %v410
  %v455 = vadd.f32 %v270, %v413
  %v456 = vadd.f32 %v271, %v418
  %v457 = vadd.f32 %v272, %v421
  %v458 = vadd.f32 %v273, %v426
  %v459 = vadd.f32 %v274, %v429
  %v460 = vadd.f32 %v275, %v434
  %v461 = vadd.f32 %v276, %v437
  %v462 = vadd.f32 %v277, %v442
  %v463 = vadd.f32 %v278, %v445
  %464 = vst [vmem:[#allocation2] sm:$0xff] %v448
  %465 = vst [vmem:[#allocation2 + $0x8] sm:$0xff] %v449
  %466 = vst [vmem:[#allocation2 + $0x10] sm:$0xff] %v450
  %467 = vst [vmem:[#allocation2 + $0x18] sm:$0xff] %v451
  %468 = vst [vmem:[#allocation2 + $0x20] sm:$0xff] %v452
  %469 = vst [vmem:[#allocation2 + $0x28] sm:$0xff] %v453
  %470 = vst [vmem:[#allocation2 + $0x30] sm:$0xff] %v454
  %471 = vst [vmem:[#allocation2 + $0x38] sm:$0xff] %v455
  %472 = vst [vmem:[#allocation2 + $0x40] sm:$0xff] %v456
  %473 = vst [vmem:[#allocation2 + $0x48] sm:$0xff] %v457
  %474 = vst [vmem:[#allocation2 + $0x50] sm:$0xff] %v458
  %475 = vst [vmem:[#allocation2 + $0x58] sm:$0xff] %v459
  %476 = vst [vmem:[#allocation2 + $0x60] sm:$0xff] %v460
  %477 = vst [vmem:[#allocation2 + $0x68] sm:$0xff] %v461
  %478 = vst [vmem:[#allocation2 + $0x70] sm:$0xff] %v462
  %479 = vst [vmem:[#allocation2 + $0x78] sm:$0xff] %v463
  // Predicated region
  $region22: #{link_predictor_forward.3} parent=0 // pred_check
    %p480 = pneg %p18
  $region23: #{link_predictor_forward.3} parent=0 // pred_check_branch
    %482 = sbr.rel (%p480) target = $region25
  $region24: #{link_predictor_forward.3} parent=0 // pred_region
    %v483 = vld [vmem:[#allocation2] sm:$0xff]
    %v484 = vld [vmem:[#allocation2 + $0x8] sm:$0xff]
    %v485 = vld [vmem:[#allocation2 + $0x10] sm:$0xff]
    %v486 = vld [vmem:[#allocation2 + $0x18] sm:$0xff]
    %v487 = vld [vmem:[#allocation2 + $0x20] sm:$0xff]
    %v488 = vld [vmem:[#allocation2 + $0x28] sm:$0xff]
    %v489 = vld [vmem:[#allocation2 + $0x30] sm:$0xff]
    %v490 = vld [vmem:[#allocation2 + $0x38] sm:$0xff]
    %v491 = vld [vmem:[#allocation2 + $0x40] sm:$0xff]
    %v492 = vld [vmem:[#allocation2 + $0x48] sm:$0xff]
    %v493 = vld [vmem:[#allocation2 + $0x50] sm:$0xff]
    %v494 = vld [vmem:[#allocation2 + $0x58] sm:$0xff]
    %v495 = vld [vmem:[#allocation2 + $0x60] sm:$0xff]
    %v496 = vld [vmem:[#allocation2 + $0x68] sm:$0xff]
    %v497 = vld [vmem:[#allocation2 + $0x70] sm:$0xff]
    %v498 = vld [vmem:[#allocation2 + $0x78] sm:$0xff]
    %v499 = vld [vmem:[%s3] sm:$0x1]
    %v501 = vlaneseq
    %v502 = vshrl.u32 %v501, 7
    %v503 = vsub.s32 0, %v502
    %v504 = vrot.slane %v499, %v503
    %v506 = vadd.f32 %v483, %v504
    %v507 = vadd.f32 %v484, %v504
    %v508 = vadd.f32 %v485, %v504
    %v509 = vadd.f32 %v486, %v504
    %v510 = vadd.f32 %v487, %v504
    %v511 = vadd.f32 %v488, %v504
    %v512 = vadd.f32 %v489, %v504
    %v513 = vadd.f32 %v490, %v504
    %v514 = vadd.f32 %v491, %v504
    %v515 = vadd.f32 %v492, %v504
    %v516 = vadd.f32 %v493, %v504
    %v517 = vadd.f32 %v494, %v504
    %v518 = vadd.f32 %v495, %v504
    %v519 = vadd.f32 %v496, %v504
    %v520 = vadd.f32 %v497, %v504
    %v521 = vadd.f32 %v498, %v504
    %v522 = vmax.f32 %v506, 0.0
    %v523 = vmax.f32 %v507, 0.0
    %v524 = vmax.f32 %v508, 0.0
    %v525 = vmax.f32 %v509, 0.0
    %v526 = vmax.f32 %v510, 0.0
    %v527 = vmax.f32 %v511, 0.0
    %v528 = vmax.f32 %v512, 0.0
    %v529 = vmax.f32 %v513, 0.0
    %v530 = vmax.f32 %v514, 0.0
    %v531 = vmax.f32 %v515, 0.0
    %v532 = vmax.f32 %v516, 0.0
    %v533 = vmax.f32 %v517, 0.0
    %v534 = vmax.f32 %v518, 0.0
    %v535 = vmax.f32 %v519, 0.0
    %v536 = vmax.f32 %v520, 0.0
    %v537 = vmax.f32 %v521, 0.0
    %v538 = vpack.c.bf16 %v523, %v522
    %v539 = vpack.c.bf16 %v525, %v524
    %v540 = vpack.c.bf16 %v527, %v526
    %v541 = vpack.c.bf16 %v529, %v528
    %v542 = vpack.c.bf16 %v531, %v530
    %v543 = vpack.c.bf16 %v533, %v532
    %v544 = vpack.c.bf16 %v535, %v534
    %v545 = vpack.c.bf16 %v537, %v536
    %v554 = vunpack.c.l.b16 %v538
    %v555 = vunpack.c.h.b16 %v538
    %v556 = vunpack.c.l.b16 %v539
    %v557 = vunpack.c.h.b16 %v539
    %v558 = vunpack.c.l.b16 %v540
    %v559 = vunpack.c.h.b16 %v540
    %v560 = vunpack.c.l.b16 %v541
    %v561 = vunpack.c.h.b16 %v541
    %v562 = vunpack.c.l.b16 %v542
    %v563 = vunpack.c.h.b16 %v542
    %v564 = vunpack.c.l.b16 %v543
    %v565 = vunpack.c.h.b16 %v543
    %v566 = vunpack.c.l.b16 %v544
    %v567 = vunpack.c.h.b16 %v544
    %v568 = vunpack.c.l.b16 %v545
    %v569 = vunpack.c.h.b16 %v545
    %v570 = vpack.c.b16 %v554, %v554
    %v571 = vpack.c.b16 %v555, %v555
    %v572 = vpack.c.b16 %v556, %v556
    %v573 = vpack.c.b16 %v557, %v557
    %v574 = vpack.c.b16 %v558, %v558
    %v575 = vpack.c.b16 %v559, %v559
    %v576 = vpack.c.b16 %v560, %v560
    %v577 = vpack.c.b16 %v561, %v561
    %v578 = vpack.c.b16 %v562, %v562
    %v579 = vpack.c.b16 %v563, %v563
    %v580 = vpack.c.b16 %v564, %v564
    %v581 = vpack.c.b16 %v565, %v565
    %v582 = vpack.c.b16 %v566, %v566
    %v583 = vpack.c.b16 %v567, %v567
    %v584 = vpack.c.b16 %v568, %v568
    %v585 = vpack.c.b16 %v569, %v569
    %602 = vst [vmem:[%s4] sm:$0xf] %v570
    %603 = vst [vmem:[%s4 + $0x4] sm:$0xf] %v571
    %604 = vst [vmem:[%s4 + $0x8] sm:$0xf] %v572
    %605 = vst [vmem:[%s4 + $0xc] sm:$0xf] %v573
    %606 = vst [vmem:[%s4 + $0x10] sm:$0xf] %v574
    %607 = vst [vmem:[%s4 + $0x14] sm:$0xf] %v575
    %608 = vst [vmem:[%s4 + $0x18] sm:$0xf] %v576
    %609 = vst [vmem:[%s4 + $0x1c] sm:$0xf] %v577
    %610 = vst [vmem:[%s4 + $0x20] sm:$0xf] %v578
    %611 = vst [vmem:[%s4 + $0x24] sm:$0xf] %v579
    %612 = vst [vmem:[%s4 + $0x28] sm:$0xf] %v580
    %613 = vst [vmem:[%s4 + $0x2c] sm:$0xf] %v581
    %614 = vst [vmem:[%s4 + $0x30] sm:$0xf] %v582
    %615 = vst [vmem:[%s4 + $0x34] sm:$0xf] %v583
    %616 = vst [vmem:[%s4 + $0x38] sm:$0xf] %v584
    %617 = vst [vmem:[%s4 + $0x3c] sm:$0xf] %v585
  $region25: #{link_predictor_forward.3} parent=0 // pred_fallthru
    _
  // Predicated region
  $region26: #{link_predictor_forward.3} parent=0 // pred_check
    _
  $region27: #{link_predictor_forward.3} parent=0 // pred_check_branch
    %619 = sbr.rel (0) target = $region29
  $region28: #{link_predictor_forward.3} parent=0 // pred_region
    _
  $region29: #{link_predictor_forward.3} parent=0 // pred_fallthru
    _
  // Predicated region
  $region30: #{link_predictor_forward.3} parent=0 // pred_check
    _
  $region31: #{link_predictor_forward.3} parent=0 // pred_check_branch
    %621 = sbr.rel (0) target = $region33
  $region32: #{link_predictor_forward.3} parent=0 // pred_region
    _
  $region33: #{link_predictor_forward.3} parent=0 // pred_fallthru
    _

// kernel: link_predictor_forward.5
$region0: #{link_predictor_forward.5}
  #allocation0 [shape = 'u32[]', space=smem, size = 0x4, offset = 0x4, fixed_abs, tag = 'smem constant byte address 0x4 - core index']
  #allocation1 [shape = 'u32[144,128]{1,0:T(1,128)}', space=vmem, size = 0x12000, scoped, tag = 'internal scratch']
  %s0 = inlined_call_operand.vmem [shape: f32[128,128], index: 0, kind: input, shape index: {}]
  %s1 = inlined_call_operand.vmem [shape: s32[2,128], index: 1, kind: input, shape index: {}]
  %s2 = inlined_call_operand.vmem [shape: f32[1,128], index: 2, kind: output, shape index: {}]
  %s3 = sld [smem:[#allocation0]]
  $region18: #{link_predictor_forward.5} parent=0
    _
  %s5 = ssub.s32 1, %s3
  %s6 = scalar_select 0, %s5, %s3
  // Predicated region
  $region2: #{link_predictor_forward.5} parent=0 // pred_check
    _
  $region3: #{link_predictor_forward.5} parent=0 // pred_check_branch
    %8 = sbr.rel (0) target = $region5
  $region4: #{link_predictor_forward.5} parent=0 // pred_region
    _
  $region5: #{link_predictor_forward.5} parent=0 // pred_fallthru
    _
  // Predicated region
  $region6: #{link_predictor_forward.5} parent=0 // pred_check
    _
  $region7: #{link_predictor_forward.5} parent=0 // pred_check_branch
    %10 = sbr.rel (0) target = $region9
  $region8: #{link_predictor_forward.5} parent=0 // pred_region
    _
  $region9: #{link_predictor_forward.5} parent=0 // pred_fallthru
    _
  %v11 = vld [vmem:[%s1] sm:$0x3]
  %v12 = vlaneseq
  %v13 = vshrl.u32 %v12, 7
  %v14 = vadd.s32 %v13, 8
  %v15 = vadd.s32 %v13, 16
  %v16 = vadd.s32 %v13, 24
  %v17 = vadd.s32 %v13, 32
  %v18 = vadd.s32 %v13, 40
  %v19 = vadd.s32 %v13, 48
  %v20 = vadd.s32 %v13, 56
  %v21 = vadd.s32 %v13, 64
  %v22 = vadd.s32 %v13, 72
  %v23 = vadd.s32 %v13, 80
  %v24 = vadd.s32 %v13, 88
  %v25 = vadd.s32 %v13, 96
  %v26 = vadd.s32 %v13, 104
  %v27 = vadd.s32 %v13, 112
  %v28 = vadd.s32 %v13, 120
  %v29 = vlaneseq
  %v30 = vshrl.u32 %v29, 7
  %v31 = vsub.s32 0, %v30
  %v32 = vrot.slane %v11, %v31
  %vm33 = vcmp.eq.s32.totalorder %v13, %v32
  %vm34 = vcmp.eq.s32.totalorder %v14, %v32
  %vm35 = vcmp.eq.s32.totalorder %v15, %v32
  %vm36 = vcmp.eq.s32.totalorder %v16, %v32
  %vm37 = vcmp.eq.s32.totalorder %v17, %v32
  %vm38 = vcmp.eq.s32.totalorder %v18, %v32
  %vm39 = vcmp.eq.s32.totalorder %v19, %v32
  %vm40 = vcmp.eq.s32.totalorder %v20, %v32
  %vm41 = vcmp.eq.s32.totalorder %v21, %v32
  %vm42 = vcmp.eq.s32.totalorder %v22, %v32
  %vm43 = vcmp.eq.s32.totalorder %v23, %v32
  %vm44 = vcmp.eq.s32.totalorder %v24, %v32
  %vm45 = vcmp.eq.s32.totalorder %v25, %v32
  %vm46 = vcmp.eq.s32.totalorder %v26, %v32
  %vm47 = vcmp.eq.s32.totalorder %v27, %v32
  %vm48 = vcmp.eq.s32.totalorder %v28, %v32
  %v49 = vsel %vm33, 1, 0
  %v50 = vsel %vm34, 1, 0
  %v51 = vsel %vm35, 1, 0
  %v52 = vsel %vm36, 1, 0
  %v53 = vsel %vm37, 1, 0
  %v54 = vsel %vm38, 1, 0
  %v55 = vsel %vm39, 1, 0
  %v56 = vsel %vm40, 1, 0
  %v57 = vsel %vm41, 1, 0
  %v58 = vsel %vm42, 1, 0
  %v59 = vsel %vm43, 1, 0
  %v60 = vsel %vm44, 1, 0
  %v61 = vsel %vm45, 1, 0
  %v62 = vsel %vm46, 1, 0
  %v63 = vsel %vm47, 1, 0
  %v64 = vsel %vm48, 1, 0
  %v65 = vcvt.s32.f32 %v49
  %v66 = vcvt.s32.f32 %v50
  %v67 = vcvt.s32.f32 %v51
  %v68 = vcvt.s32.f32 %v52
  %v69 = vcvt.s32.f32 %v53
  %v70 = vcvt.s32.f32 %v54
  %v71 = vcvt.s32.f32 %v55
  %v72 = vcvt.s32.f32 %v56
  %v73 = vcvt.s32.f32 %v57
  %v74 = vcvt.s32.f32 %v58
  %v75 = vcvt.s32.f32 %v59
  %v76 = vcvt.s32.f32 %v60
  %v77 = vcvt.s32.f32 %v61
  %v78 = vcvt.s32.f32 %v62
  %v79 = vcvt.s32.f32 %v63
  %v80 = vcvt.s32.f32 %v64
  %v81 = vlaneseq
  %v82 = vshrl.u32 %v81, 7
  %v83 = vsub.s32 1, %v82
  %v84 = vrot.slane %v11, %v83
  %vm85 = vcmp.eq.s32.totalorder %v13, %v84
  %vm86 = vcmp.eq.s32.totalorder %v14, %v84
  %vm87 = vcmp.eq.s32.totalorder %v15, %v84
  %vm88 = vcmp.eq.s32.totalorder %v16, %v84
  %vm89 = vcmp.eq.s32.totalorder %v17, %v84
  %vm90 = vcmp.eq.s32.totalorder %v18, %v84
  %vm91 = vcmp.eq.s32.totalorder %v19, %v84
  %vm92 = vcmp.eq.s32.totalorder %v20, %v84
  %vm93 = vcmp.eq.s32.totalorder %v21, %v84
  %vm94 = vcmp.eq.s32.totalorder %v22, %v84
  %vm95 = vcmp.eq.s32.totalorder %v23, %v84
  %vm96 = vcmp.eq.s32.totalorder %v24, %v84
  %vm97 = vcmp.eq.s32.totalorder %v25, %v84
  %vm98 = vcmp.eq.s32.totalorder %v26, %v84
  %vm99 = vcmp.eq.s32.totalorder %v27, %v84
  %vm100 = vcmp.eq.s32.totalorder %v28, %v84
  %v101 = vsel %vm85, 1, 0
  %v102 = vsel %vm86, 1, 0
  %v103 = vsel %vm87, 1, 0
  %v104 = vsel %vm88, 1, 0
  %v105 = vsel %vm89, 1, 0
  %v106 = vsel %vm90, 1, 0
  %v107 = vsel %vm91, 1, 0
  %v108 = vsel %vm92, 1, 0
  %v109 = vsel %vm93, 1, 0
  %v110 = vsel %vm94, 1, 0
  %v111 = vsel %vm95, 1, 0
  %v112 = vsel %vm96, 1, 0
  %v113 = vsel %vm97, 1, 0
  %v114 = vsel %vm98, 1, 0
  %v115 = vsel %vm99, 1, 0
  %v116 = vsel %vm100, 1, 0
  %v117 = vcvt.s32.f32 %v101
  %v118 = vcvt.s32.f32 %v102
  %v119 = vcvt.s32.f32 %v103
  %v120 = vcvt.s32.f32 %v104
  %v121 = vcvt.s32.f32 %v105
  %v122 = vcvt.s32.f32 %v106
  %v123 = vcvt.s32.f32 %v107
  %v124 = vcvt.s32.f32 %v108
  %v125 = vcvt.s32.f32 %v109
  %v126 = vcvt.s32.f32 %v110
  %v127 = vcvt.s32.f32 %v111
  %v128 = vcvt.s32.f32 %v112
  %v129 = vcvt.s32.f32 %v113
  %v130 = vcvt.s32.f32 %v114
  %v131 = vcvt.s32.f32 %v115
  %v132 = vcvt.s32.f32 %v116
  %v133 = vld [vmem:[%s0] sm:$0xff]
  %v134 = vld [vmem:[%s0 + $0x8] sm:$0xff]
  %v135 = vld [vmem:[%s0 + $0x10] sm:$0xff]
  %v136 = vld [vmem:[%s0 + $0x18] sm:$0xff]
  %v137 = vld [vmem:[%s0 + $0x20] sm:$0xff]
  %v138 = vld [vmem:[%s0 + $0x28] sm:$0xff]
  %v139 = vld [vmem:[%s0 + $0x30] sm:$0xff]
  %v140 = vld [vmem:[%s0 + $0x38] sm:$0xff]
  %v141 = vld [vmem:[%s0 + $0x40] sm:$0xff]
  %v142 = vld [vmem:[%s0 + $0x48] sm:$0xff]
  %v143 = vld [vmem:[%s0 + $0x50] sm:$0xff]
  %v144 = vld [vmem:[%s0 + $0x58] sm:$0xff]
  %v145 = vld [vmem:[%s0 + $0x60] sm:$0xff]
  %v146 = vld [vmem:[%s0 + $0x68] sm:$0xff]
  %v147 = vld [vmem:[%s0 + $0x70] sm:$0xff]
  %v148 = vld [vmem:[%s0 + $0x78] sm:$0xff]
  %149 = vxpose.xlu0.b32.start [1/16] %v133, 128
  %150 = vxpose.xlu0.b32.cont [2/16] %v134, 128
  %151 = vxpose.xlu0.b32.cont [3/16] %v135, 128
  %152 = vxpose.xlu0.b32.cont [4/16] %v136, 128
  %153 = vxpose.xlu0.b32.cont [5/16] %v137, 128
  %154 = vxpose.xlu0.b32.cont [6/16] %v138, 128
  %155 = vxpose.xlu0.b32.cont [7/16] %v139, 128
  %156 = vxpose.xlu0.b32.cont [8/16] %v140, 128
  %157 = vxpose.xlu0.b32.cont [9/16] %v141, 128
  %158 = vxpose.xlu0.b32.cont [10/16] %v142, 128
  %159 = vxpose.xlu0.b32.cont [11/16] %v143, 128
  %160 = vxpose.xlu0.b32.cont [12/16] %v144, 128
  %161 = vxpose.xlu0.b32.cont [13/16] %v145, 128
  %162 = vxpose.xlu0.b32.cont [14/16] %v146, 128
  %163 = vxpose.xlu0.b32.cont [15/16] %v147, 128
  %164 = vxpose.xlu0.b32.end [16/16] %v148, 128
  %v165 = vpop.trf.xlu0
  %v166 = vpop.trf.xlu0
  %v167 = vpop.trf.xlu0
  %v168 = vpop.trf.xlu0
  %v169 = vpop.trf.xlu0
  %v170 = vpop.trf.xlu0
  %v171 = vpop.trf.xlu0
  %v172 = vpop.trf.xlu0
  %v173 = vpop.trf.xlu0
  %v174 = vpop.trf.xlu0
  %v175 = vpop.trf.xlu0
  %v176 = vpop.trf.xlu0
  %v177 = vpop.trf.xlu0
  %v178 = vpop.trf.xlu0
  %v179 = vpop.trf.xlu0
  %v180 = vpop.trf.xlu0
  %181 = vmatprep.subr.mxu0 0.0
  %182 = vmatpush1.msra.mxu0 %v65
  %183 = vmatprep.subr.mxu0 0.0
  %184 = vmatpush1.msra.mxu0 %v66
  %185 = vmatprep.subr.mxu0 0.0
  %186 = vmatpush1.msra.mxu0 %v67
  %187 = vmatprep.subr.mxu0 0.0
  %188 = vmatpush1.msra.mxu0 %v68
  %189 = vmatprep.subr.mxu0 0.0
  %190 = vmatpush1.msra.mxu0 %v69
  %191 = vmatprep.subr.mxu0 0.0
  %192 = vmatpush1.msra.mxu0 %v70
  %193 = vmatprep.subr.mxu0 0.0
  %194 = vmatpush1.msra.mxu0 %v71
  %195 = vmatprep.subr.mxu0 0.0
  %196 = vmatpush1.msra.mxu0 %v72
  %197 = vmatprep.subr.mxu0 0.0
  %198 = vmatpush1.msra.mxu0 %v73
  %199 = vmatprep.subr.mxu0 0.0
  %200 = vmatpush1.msra.mxu0 %v74
  %201 = vmatprep.subr.mxu0 0.0
  %202 = vmatpush1.msra.mxu0 %v75
  %203 = vmatprep.subr.mxu0 0.0
  %204 = vmatpush1.msra.mxu0 %v76
  %205 = vmatprep.subr.mxu0 0.0
  %206 = vmatpush1.msra.mxu0 %v77
  %207 = vmatprep.subr.mxu0 0.0
  %208 = vmatpush1.msra.mxu0 %v78
  %209 = vmatprep.subr.mxu0 0.0
  %210 = vmatpush1.msra.mxu0 %v79
  %211 = vmatprep.subr.mxu0 0.0
  %212 = vmatpush1.msra.mxu0 %v80
  %213 = vmatprep.subr.mxu0 0.0
  %214 = vmatpush1.msra.mxu0 0.0
  %215 = vmatprep.subr.mxu0 0.0
  %216 = vmatpush1.msra.mxu0 0.0
  %217 = vmatprep.subr.mxu0 0.0
  %218 = vmatpush1.msra.mxu0 0.0
  %219 = vmatprep.subr.mxu0 0.0
  %220 = vmatpush1.msra.mxu0 0.0
  %221 = vmatprep.subr.mxu0 0.0
  %222 = vmatpush1.msra.mxu0 0.0
  %223 = vmatprep.subr.mxu0 0.0
  %224 = vmatpush1.msra.mxu0 0.0
  %225 = vmatprep.subr.mxu0 0.0
  %226 = vmatpush1.msra.mxu0 0.0
  %227 = vmatprep.subr.mxu0 0.0
  %228 = vmatpush1.msra.mxu0 0.0
  %229 = vmatprep.subr.mxu0 0.0
  %230 = vmatpush1.msra.mxu0 0.0
  %231 = vmatprep.subr.mxu0 0.0
  %232 = vmatpush1.msra.mxu0 0.0
  %233 = vmatprep.subr.mxu0 0.0
  %234 = vmatpush1.msra.mxu0 0.0
  %235 = vmatprep.subr.mxu0 0.0
  %236 = vmatpush1.msra.mxu0 0.0
  %237 = vmatprep.subr.mxu0 0.0
  %238 = vmatpush1.msra.mxu0 0.0
  %239 = vmatprep.subr.mxu0 0.0
  %240 = vmatpush1.msra.mxu0 0.0
  %241 = vmatprep.subr.mxu0 0.0
  %242 = vmatpush1.msra.mxu0 0.0
  %243 = vmatprep.subr.mxu0 0.0
  %244 = vmatpush1.msra.mxu0 0.0
  %245 = vmatprep.mubr.f32.mxu0 0.0
  %246 = vmatmul.mubr.f32.gmra.mrb[0].mxu0 %v165
  %v247 = vpop.f32.mrb[0].mxu0
  %v248 = vadd.f32 0.0, %v247
  %v249 = vpop.f32.mrb[0].mxu0
  %250 = vmatprep.mubr.f32.mxu0 0.0
  %251 = vmatmul.mubr.f32.gmra.mrb[0].mxu0 %v166
  %v252 = vpop.f32.mrb[0].mxu0
  %v253 = vadd.f32 0.0, %v252
  %v254 = vpop.f32.mrb[0].mxu0
  %255 = vmatprep.mubr.f32.mxu0 0.0
  %256 = vmatmul.mubr.f32.gmra.mrb[0].mxu0 %v167
  %v257 = vpop.f32.mrb[0].mxu0
  %v258 = vadd.f32 0.0, %v257
  %v259 = vpop.f32.mrb[0].mxu0
  %260 = vmatprep.mubr.f32.mxu0 0.0
  %261 = vmatmul.mubr.f32.gmra.mrb[0].mxu0 %v168
  %v262 = vpop.f32.mrb[0].mxu0
  %v263 = vadd.f32 0.0, %v262
  %v264 = vpop.f32.mrb[0].mxu0
  %265 = vmatprep.mubr.f32.mxu0 0.0
  %266 = vmatmul.mubr.f32.gmra.mrb[0].mxu0 %v169
  %v267 = vpop.f32.mrb[0].mxu0
  %v268 = vadd.f32 0.0, %v267
  %v269 = vpop.f32.mrb[0].mxu0
  %270 = vmatprep.mubr.f32.mxu0 0.0
  %271 = vmatmul.mubr.f32.gmra.mrb[0].mxu0 %v170
  %v272 = vpop.f32.mrb[0].mxu0
  %v273 = vadd.f32 0.0, %v272
  %v274 = vpop.f32.mrb[0].mxu0
  %275 = vmatprep.mubr.f32.mxu0 0.0
  %276 = vmatmul.mubr.f32.gmra.mrb[0].mxu0 %v171
  %v277 = vpop.f32.mrb[0].mxu0
  %v278 = vadd.f32 0.0, %v277
  %v279 = vpop.f32.mrb[0].mxu0
  %280 = vmatprep.mubr.f32.mxu0 0.0
  %281 = vmatmul.mubr.f32.gmra.mrb[0].mxu0 %v172
  %v282 = vpop.f32.mrb[0].mxu0
  %v283 = vadd.f32 0.0, %v282
  %v284 = vpop.f32.mrb[0].mxu0
  %285 = vmatprep.mubr.f32.mxu0 0.0
  %286 = vmatmul.mubr.f32.gmra.mrb[0].mxu0 %v173
  %v287 = vpop.f32.mrb[0].mxu0
  %v288 = vadd.f32 0.0, %v287
  %v289 = vpop.f32.mrb[0].mxu0
  %290 = vmatprep.mubr.f32.mxu0 0.0
  %291 = vmatmul.mubr.f32.gmra.mrb[0].mxu0 %v174
  %v292 = vpop.f32.mrb[0].mxu0
  %v293 = vadd.f32 0.0, %v292
  %v294 = vpop.f32.mrb[0].mxu0
  %295 = vmatprep.mubr.f32.mxu0 0.0
  %296 = vmatmul.mubr.f32.gmra.mrb[0].mxu0 %v175
  %v297 = vpop.f32.mrb[0].mxu0
  %v298 = vadd.f32 0.0, %v297
  %v299 = vpop.f32.mrb[0].mxu0
  %300 = vmatprep.mubr.f32.mxu0 0.0
  %301 = vmatmul.mubr.f32.gmra.mrb[0].mxu0 %v176
  %v302 = vpop.f32.mrb[0].mxu0
  %v303 = vadd.f32 0.0, %v302
  %v304 = vpop.f32.mrb[0].mxu0
  %305 = vmatprep.mubr.f32.mxu0 0.0
  %306 = vmatmul.mubr.f32.gmra.mrb[0].mxu0 %v177
  %v307 = vpop.f32.mrb[0].mxu0
  %v308 = vadd.f32 0.0, %v307
  %v309 = vpop.f32.mrb[0].mxu0
  %310 = vmatprep.mubr.f32.mxu0 0.0
  %311 = vmatmul.mubr.f32.gmra.mrb[0].mxu0 %v178
  %v312 = vpop.f32.mrb[0].mxu0
  %v313 = vadd.f32 0.0, %v312
  %v314 = vpop.f32.mrb[0].mxu0
  %315 = vmatprep.mubr.f32.mxu0 0.0
  %316 = vmatmul.mubr.f32.gmra.mrb[0].mxu0 %v179
  %v317 = vpop.f32.mrb[0].mxu0
  %v318 = vadd.f32 0.0, %v317
  %v319 = vpop.f32.mrb[0].mxu0
  %320 = vmatprep.mubr.f32.mxu0 0.0
  %321 = vmatmul.mubr.f32.gmra.mrb[0].mxu0 %v180
  %v322 = vpop.f32.mrb[0].mxu0
  %v323 = vadd.f32 0.0, %v322
  %v324 = vpop.f32.mrb[0].mxu0
  %325 = vdwg.mxu0
  %326 = vmatprep.subr.mxu0 0.0
  %327 = vmatpush1.msra.mxu0 %v117
  %328 = vmatprep.subr.mxu0 0.0
  %329 = vmatpush1.msra.mxu0 %v118
  %330 = vmatprep.subr.mxu0 0.0
  %331 = vmatpush1.msra.mxu0 %v119
  %332 = vmatprep.subr.mxu0 0.0
  %333 = vmatpush1.msra.mxu0 %v120
  %334 = vmatprep.subr.mxu0 0.0
  %335 = vmatpush1.msra.mxu0 %v121
  %336 = vmatprep.subr.mxu0 0.0
  %337 = vmatpush1.msra.mxu0 %v122
  %338 = vmatprep.subr.mxu0 0.0
  %339 = vmatpush1.msra.mxu0 %v123
  %340 = vmatprep.subr.mxu0 0.0
  %341 = vmatpush1.msra.mxu0 %v124
  %342 = vmatprep.subr.mxu0 0.0
  %343 = vmatpush1.msra.mxu0 %v125
  %344 = vmatprep.subr.mxu0 0.0
  %345 = vmatpush1.msra.mxu0 %v126
  %346 = vmatprep.subr.mxu0 0.0
  %347 = vmatpush1.msra.mxu0 %v127
  %348 = vmatprep.subr.mxu0 0.0
  %349 = vmatpush1.msra.mxu0 %v128
  %350 = vmatprep.subr.mxu0 0.0
  %351 = vmatpush1.msra.mxu0 %v129
  %352 = vmatprep.subr.mxu0 0.0
  %353 = vmatpush1.msra.mxu0 %v130
  %354 = vmatprep.subr.mxu0 0.0
  %355 = vmatpush1.msra.mxu0 %v131
  %356 = vmatprep.subr.mxu0 0.0
  %357 = vmatpush1.msra.mxu0 %v132
  %358 = vmatprep.subr.mxu0 0.0
  %359 = vmatpush1.msra.mxu0 0.0
  %360 = vmatprep.subr.mxu0 0.0
  %361 = vmatpush1.msra.mxu0 0.0
  %362 = vmatprep.subr.mxu0 0.0
  %363 = vmatpush1.msra.mxu0 0.0
  %364 = vmatprep.subr.mxu0 0.0
  %365 = vmatpush1.msra.mxu0 0.0
  %366 = vmatprep.subr.mxu0 0.0
  %367 = vmatpush1.msra.mxu0 0.0
  %368 = vmatprep.subr.mxu0 0.0
  %369 = vmatpush1.msra.mxu0 0.0
  %370 = vmatprep.subr.mxu0 0.0
  %371 = vmatpush1.msra.mxu0 0.0
  %372 = vmatprep.subr.mxu0 0.0
  %373 = vmatpush1.msra.mxu0 0.0
  %374 = vmatprep.subr.mxu0 0.0
  %375 = vmatpush1.msra.mxu0 0.0
  %376 = vmatprep.subr.mxu0 0.0
  %377 = vmatpush1.msra.mxu0 0.0
  %378 = vmatprep.subr.mxu0 0.0
  %379 = vmatpush1.msra.mxu0 0.0
  %380 = vmatprep.subr.mxu0 0.0
  %381 = vmatpush1.msra.mxu0 0.0
  %382 = vmatprep.subr.mxu0 0.0
  %383 = vmatpush1.msra.mxu0 0.0
  %384 = vmatprep.subr.mxu0 0.0
  %385 = vmatpush1.msra.mxu0 0.0
  %386 = vmatprep.subr.mxu0 0.0
  %387 = vmatpush1.msra.mxu0 0.0
  %388 = vmatprep.subr.mxu0 0.0
  %389 = vmatpush1.msra.mxu0 0.0
  %390 = vmatprep.mubr.f32.mxu0 0.0
  %391 = vmatmul.mubr.f32.gmra.mrb[0].mxu0 %v165
  %v392 = vpop.f32.mrb[0].mxu0
  %v393 = vadd.f32 0.0, %v392
  %v394 = vpop.f32.mrb[0].mxu0
  %395 = vmatprep.mubr.f32.mxu0 0.0
  %396 = vmatmul.mubr.f32.gmra.mrb[0].mxu0 %v166
  %v397 = vpop.f32.mrb[0].mxu0
  %v398 = vadd.f32 0.0, %v397
  %v399 = vpop.f32.mrb[0].mxu0
  %400 = vmatprep.mubr.f32.mxu0 0.0
  %401 = vmatmul.mubr.f32.gmra.mrb[0].mxu0 %v167
  %v402 = vpop.f32.mrb[0].mxu0
  %v403 = vadd.f32 0.0, %v402
  %v404 = vpop.f32.mrb[0].mxu0
  %405 = vmatprep.mubr.f32.mxu0 0.0
  %406 = vmatmul.mubr.f32.gmra.mrb[0].mxu0 %v168
  %v407 = vpop.f32.mrb[0].mxu0
  %v408 = vadd.f32 0.0, %v407
  %v409 = vpop.f32.mrb[0].mxu0
  %410 = vmatprep.mubr.f32.mxu0 0.0
  %411 = vmatmul.mubr.f32.gmra.mrb[0].mxu0 %v169
  %v412 = vpop.f32.mrb[0].mxu0
  %v413 = vadd.f32 0.0, %v412
  %v414 = vpop.f32.mrb[0].mxu0
  %415 = vmatprep.mubr.f32.mxu0 0.0
  %416 = vmatmul.mubr.f32.gmra.mrb[0].mxu0 %v170
  %v417 = vpop.f32.mrb[0].mxu0
  %v418 = vadd.f32 0.0, %v417
  %v419 = vpop.f32.mrb[0].mxu0
  %420 = vmatprep.mubr.f32.mxu0 0.0
  %421 = vmatmul.mubr.f32.gmra.mrb[0].mxu0 %v171
  %v422 = vpop.f32.mrb[0].mxu0
  %v423 = vadd.f32 0.0, %v422
  %v424 = vpop.f32.mrb[0].mxu0
  %425 = vmatprep.mubr.f32.mxu0 0.0
  %426 = vmatmul.mubr.f32.gmra.mrb[0].mxu0 %v172
  %v427 = vpop.f32.mrb[0].mxu0
  %v428 = vadd.f32 0.0, %v427
  %v429 = vpop.f32.mrb[0].mxu0
  %430 = vmatprep.mubr.f32.mxu0 0.0
  %431 = vmatmul.mubr.f32.gmra.mrb[0].mxu0 %v173
  %v432 = vpop.f32.mrb[0].mxu0
  %v433 = vadd.f32 0.0, %v432
  %v434 = vpop.f32.mrb[0].mxu0
  %435 = vmatprep.mubr.f32.mxu0 0.0
  %436 = vmatmul.mubr.f32.gmra.mrb[0].mxu0 %v174
  %v437 = vpop.f32.mrb[0].mxu0
  %v438 = vadd.f32 0.0, %v437
  %v439 = vpop.f32.mrb[0].mxu0
  %440 = vmatprep.mubr.f32.mxu0 0.0
  %441 = vmatmul.mubr.f32.gmra.mrb[0].mxu0 %v175
  %v442 = vpop.f32.mrb[0].mxu0
  %v443 = vadd.f32 0.0, %v442
  %v444 = vpop.f32.mrb[0].mxu0
  %445 = vmatprep.mubr.f32.mxu0 0.0
  %446 = vmatmul.mubr.f32.gmra.mrb[0].mxu0 %v176
  %v447 = vpop.f32.mrb[0].mxu0
  %v448 = vadd.f32 0.0, %v447
  %v449 = vpop.f32.mrb[0].mxu0
  %450 = vmatprep.mubr.f32.mxu0 0.0
  %451 = vmatmul.mubr.f32.gmra.mrb[0].mxu0 %v177
  %v452 = vpop.f32.mrb[0].mxu0
  %v453 = vadd.f32 0.0, %v452
  %v454 = vpop.f32.mrb[0].mxu0
  %455 = vmatprep.mubr.f32.mxu0 0.0
  %456 = vmatmul.mubr.f32.gmra.mrb[0].mxu0 %v178
  %v457 = vpop.f32.mrb[0].mxu0
  %v458 = vadd.f32 0.0, %v457
  %v459 = vpop.f32.mrb[0].mxu0
  %460 = vmatprep.mubr.f32.mxu0 0.0
  %461 = vmatmul.mubr.f32.gmra.mrb[0].mxu0 %v179
  %v462 = vpop.f32.mrb[0].mxu0
  %v463 = vadd.f32 0.0, %v462
  %v464 = vpop.f32.mrb[0].mxu0
  %465 = vmatprep.mubr.f32.mxu0 0.0
  %466 = vmatmul.mubr.f32.gmra.mrb[0].mxu0 %v180
  %v467 = vpop.f32.mrb[0].mxu0
  %v468 = vadd.f32 0.0, %v467
  %v469 = vpop.f32.mrb[0].mxu0
  %470 = vdwg.mxu0
  %v471 = vmul.f32 %v248, %v393
  %v472 = vmul.f32 %v253, %v398
  %v473 = vmul.f32 %v258, %v403
  %v474 = vmul.f32 %v263, %v408
  %v475 = vmul.f32 %v268, %v413
  %v476 = vmul.f32 %v273, %v418
  %v477 = vmul.f32 %v278, %v423
  %v478 = vmul.f32 %v283, %v428
  %v479 = vmul.f32 %v288, %v433
  %v480 = vmul.f32 %v293, %v438
  %v481 = vmul.f32 %v298, %v443
  %v482 = vmul.f32 %v303, %v448
  %v483 = vmul.f32 %v308, %v453
  %v484 = vmul.f32 %v313, %v458
  %v485 = vmul.f32 %v318, %v463
  %v486 = vmul.f32 %v323, %v468
  %v487 = vadd.f32 %v471, %v472
  %v488 = vadd.f32 %v487, %v473
  %v489 = vadd.f32 %v488, %v474
  %v490 = vadd.f32 %v489, %v475
  %v491 = vadd.f32 %v490, %v476
  %v492 = vadd.f32 %v491, %v477
  %v493 = vadd.f32 %v492, %v478
  %v494 = vadd.f32 %v493, %v479
  %v495 = vadd.f32 %v494, %v480
  %v496 = vadd.f32 %v495, %v481
  %v497 = vadd.f32 %v496, %v482
  %v498 = vadd.f32 %v497, %v483
  %v499 = vadd.f32 %v498, %v484
  %v500 = vadd.f32 %v499, %v485
  %v501 = vadd.f32 %v500, %v486
  %v502 = vrot.slane %v501, 4
  %v503 = vadd.f32 %v501, %v502
  %v504 = vrot.slane %v503, 2
  %v505 = vadd.f32 %v503, %v504
  %v506 = vrot.slane %v505, 1
  %v507 = vadd.f32 %v505, %v506
  %508 = vst [vmem:[%s2] sm:$0x1] %v507
  // Predicated region
  $region10: #{link_predictor_forward.5} parent=0 // pred_check
    _
  $region11: #{link_predictor_forward.5} parent=0 // pred_check_branch
    %510 = sbr.rel (0) target = $region13
  $region12: #{link_predictor_forward.5} parent=0 // pred_region
    _
  $region13: #{link_predictor_forward.5} parent=0 // pred_fallthru
    _
  // Predicated region
  $region14: #{link_predictor_forward.5} parent=0 // pred_check
    _
  $region15: #{link_predictor_forward.5} parent=0 // pred_check_branch
    %512 = sbr.rel (0) target = $region17
  $region16: #{link_predictor_forward.5} parent=0 // pred_region
    _
  $region17: #{link_predictor_forward.5} parent=0 // pred_fallthru
    _

</llo_original>
